<compile_context>
chip_gen: v7x
topology: tpu7x:2x2x1
jax: 0.10.0
libtpu: 0.0.40
codegen_flags: <defaults>
</compile_context>

<pallas_src>
import functools

import jax
import jax.numpy as jnp
from jax.experimental import pallas as pl
from jax.experimental.pallas import tpu as pltpu


def _round_up(a: int, b: int) -> int:
    return (a + b - 1) // b * b


def _cdiv(a: int, b: int) -> int:
    return (a + b - 1) // b


# ---------------------------------------------------------------------------
# Fused kernel: relation table resident in VMEM, relation rows gathered
# in-kernel via one-hot matmul.
#   s_ref, o_ref : (TM, k*d) f32   packed entity embeddings
#   ridx_ref     : (TM, k)   i32   packed relation indices
#   rcat_ref     : (R, 2*d)  f32   [R_head | R_tail], resident across the grid
#   out_ref      : (TM, k)   f32   scores
# ---------------------------------------------------------------------------
def _e_score_fused_kernel(s_ref, o_ref, ridx_ref, rcat_ref, out_ref, *, k, d,
                          rel_count):
    s = s_ref[...]
    o = o_ref[...]
    ridx = ridx_ref[...]
    rcat = rcat_ref[...]
    tm = s.shape[0]
    rel_iota = jax.lax.broadcasted_iota(jnp.int32, (tm, rel_count), 1)
    cols = []
    for j in range(k):
        # One-hot row-select of [R_head | R_tail] on the otherwise-idle MXU.
        onehot = (rel_iota == ridx[:, j:j + 1]).astype(jnp.float32)   # (TM, R)
        g = jnp.dot(onehot, rcat, preferred_element_type=jnp.float32,
                    precision=jax.lax.Precision.HIGHEST)              # (TM, 2d)
        rh = g[:, :d]
        rt = g[:, d:]
        s_j = s[:, j * d:(j + 1) * d]
        o_j = o[:, j * d:(j + 1) * d]
        cols.append(jnp.sum(s_j * rh + o_j * rt, axis=-1, keepdims=True))
    out_ref[...] = cols[0] if k == 1 else jnp.concatenate(cols, axis=-1)


# ---------------------------------------------------------------------------
# Fallback kernel (relation table too big for VMEM residency): relation rows
# pre-gathered in JAX from the concatenated table -> one wide stream.
#   rcat_ref : (TM, k*2*d) f32, segment j = [rh_j | rt_j]
# ---------------------------------------------------------------------------
def _e_score_mat_kernel(s_ref, o_ref, rcat_ref, out_ref, *, k, d):
    s = s_ref[...]
    o = o_ref[...]
    rc = rcat_ref[...]
    cols = []
    for j in range(k):
        rh = rc[:, j * 2 * d: j * 2 * d + d]
        rt = rc[:, j * 2 * d + d: (j + 1) * 2 * d]
        s_j = s[:, j * d:(j + 1) * d]
        o_j = o[:, j * d:(j + 1) * d]
        cols.append(jnp.sum(s_j * rh + o_j * rt, axis=-1, keepdims=True))
    out_ref[...] = cols[0] if k == 1 else jnp.concatenate(cols, axis=-1)


@jax.jit
def e_score(E, R_head, R_tail, s_idx, r_idx, o_idx):
    """Forward pass of the `E` model: (E[s]*R_head[r] + E[o]*R_tail[r]).sum(-1)."""
    batch, x = s_idx.shape
    dim = E.shape[-1]
    rel_count = R_head.shape[0]
    n = batch * x

    # ---- lane-packing factor: fill the 128-wide lane axis ------------------
    k = 1
    for cand in range(1, 17):
        if (cand * dim) % 128 == 0 and cand * dim <= 1024:
            k = cand
            break
    else:
        if dim < 128:
            k = max(1, 128 // dim)   # partial fill for awkward small dims
    dp = k * dim                      # packed lane width

    # ---- relation table path selection --------------------------------------
    rcat_table = jnp.concatenate([R_head, R_tail], axis=-1)   # (R, 2*dim)
    table_bytes = rel_count * 2 * dim * 4
    fused = (table_bytes <= 4 * 1024 * 1024) and (rel_count <= 2048)

    # ---- tile sizing (budget ~12 MiB of double-buffered streams + temps) ----
    if fused:
        per_row_bytes = 4 * (6 * dp + 8 * k + rel_count + 2 * dim)
    else:
        per_row_bytes = 4 * (14 * dp + 2 * k)
    tile_m = (12 * 1024 * 1024) // per_row_bytes
    tile_m = max(8, min(4096, (tile_m // 8) * 8))

    rows_needed = _cdiv(n, k)
    # v7x megacore: aim for >= 4 grid steps when there is enough work.
    if rows_needed >= 32:
        tile_m = min(tile_m, _round_up(_cdiv(rows_needed, 4), 8))
    if rows_needed <= tile_m:
        tile_m = _round_up(rows_needed, 8)
    rows = _round_up(rows_needed, tile_m)
    n_pad = rows * k

    def _pad_flat(idx):
        flat = idx.reshape(-1).astype(jnp.int32)
        return jnp.pad(flat, (0, n_pad - n))   # pad with index 0 (valid row)

    s_flat = _pad_flat(s_idx)
    o_flat = _pad_flat(o_idx)
    r_flat = _pad_flat(r_idx)

    # Entity gathers stay in plain JAX (note: jnp.take clips OOB indices,
    # torch's nn.Embedding would raise).
    # TODO(synk): fuse these gathers into the pallas_call input pipeline.
    s_emb = jnp.take(E, s_flat, axis=0).reshape(rows, dp)
    o_emb = jnp.take(E, o_flat, axis=0).reshape(rows, dp)

    grid = (rows // tile_m,)
    compiler_params = pltpu.CompilerParams(
        dimension_semantics=("parallel",),
        vmem_limit_bytes=32 * 1024 * 1024,
    )
    out_shape = jax.ShapeDtypeStruct((rows, k), jnp.float32)
    row_spec = pl.BlockSpec((tile_m, dp), lambda i: (i, 0))
    idx_spec = pl.BlockSpec((tile_m, k), lambda i: (i, 0))
    out_spec = pl.BlockSpec((tile_m, k), lambda i: (i, 0))

    if fused:
        ridx = r_flat.reshape(rows, k)
        kernel = functools.partial(_e_score_fused_kernel, k=k, d=dim,
                                   rel_count=rel_count)
        scores = pl.pallas_call(
            kernel,
            out_shape=out_shape,
            grid_spec=pltpu.PrefetchScalarGridSpec(
                num_scalar_prefetch=0,
                grid=grid,
                in_specs=[
                    row_spec,                                           # s_emb
                    row_spec,                                           # o_emb
                    idx_spec,                                           # r indices
                    pl.BlockSpec((rel_count, 2 * dim), lambda i: (0, 0)),  # resident table
                ],
                out_specs=out_spec,
            ),
            compiler_params=compiler_params,
        )(s_emb, o_emb, ridx, rcat_table)
    else:
        rcat_emb = jnp.take(rcat_table, r_flat, axis=0).reshape(rows, 2 * dp)
        kernel = functools.partial(_e_score_mat_kernel, k=k, d=dim)
        scores = pl.pallas_call(
            kernel,
            out_shape=out_shape,
            grid_spec=pltpu.PrefetchScalarGridSpec(
                num_scalar_prefetch=0,
                grid=grid,
                in_specs=[
                    row_spec,                                           # s_emb
                    row_spec,                                           # o_emb
                    pl.BlockSpec((tile_m, 2 * dp), lambda i: (i, 0)),   # gathered rels
                ],
                out_specs=out_spec,
            ),
            compiler_params=compiler_params,
        )(s_emb, o_emb, rcat_emb)

    return scores.reshape(n_pad)[:n].reshape(batch, x)


if __name__ == "__main__":
    # Small, module-consistent shapes.
    entity_count = 32
    relation_count = 8
    embedding_dim = 32
    batch, x = 2, 8

    key = jax.random.PRNGKey(0)
    k_e, k_rh, k_rt, k_s, k_r, k_o = jax.random.split(key, 6)

    # Deterministic parameter init mirroring torch.nn.init.normal_(w, 0, 0.05).
    E = 0.05 * jax.random.normal(k_e, (entity_count, embedding_dim), jnp.float32)
    R_head = 0.05 * jax.random.normal(k_rh, (relation_count, embedding_dim), jnp.float32)
    R_tail = 0.05 * jax.random.normal(k_rt, (relation_count, embedding_dim), jnp.float32)

    s_idx = jax.random.randint(k_s, (batch, x), 0, entity_count, jnp.int32)
    r_idx = jax.random.randint(k_r, (batch, x), 0, relation_count, jnp.int32)
    o_idx = jax.random.randint(k_o, (batch, x), 0, entity_count, jnp.int32)

    out = e_score(E, R_head, R_tail, s_idx, r_idx, o_idx)
    jax.block_until_ready(out)

    # Pure-JAX reference check: (s*r_head + o*r_tail).sum(-1).
    ref = (E[s_idx] * R_head[r_idx] + E[o_idx] * R_tail[r_idx]).sum(axis=-1)
    assert out.shape == (batch, x)
    assert jnp.allclose(out, ref, atol=1e-5, rtol=1e-5)

    print("KERNEL_OK")
</pallas_src>

<mosaic_0001>
module attributes {stable_mosaic.version = 11 : i64} {
  func.func @_e_score_fused_kernel(%arg0: i32, %arg1: memref<8x128xf32, #tpu.memory_space<vmem>>, %arg2: memref<8x128xf32, #tpu.memory_space<vmem>>, %arg3: memref<8x4xi32, #tpu.memory_space<vmem>>, %arg4: memref<8x64xf32, #tpu.memory_space<vmem>>, %arg5: memref<8x4xf32, #tpu.memory_space<vmem>>) attributes {dimension_semantics = [#tpu.dimension_semantics<parallel>], iteration_bounds = array<i64: 1>, scalar_prefetch = 0 : i64, scratch_operands = 0 : i64, tpu.core_type = #tpu.core_type<tc>, window_params = [{transform_indices = @transform_0, window_bounds = array<i64: 8, 128>}, {transform_indices = @transform_1, window_bounds = array<i64: 8, 128>}, {transform_indices = @transform_2, window_bounds = array<i64: 8, 4>}, {pipeline_mode = #tpu.pipeline_mode<synchronous>, transform_indices = @transform_3, window_bounds = array<i64: 8, 64>}, {transform_indices = @transform_4, window_bounds = array<i64: 8, 4>}]} {
    %c0 = arith.constant 0 : index
    %c0_0 = arith.constant 0 : index
    %0 = vector.load %arg1[%c0, %c0_0] : memref<8x128xf32, #tpu.memory_space<vmem>>, vector<8x128xf32>
    %c0_1 = arith.constant 0 : index
    %c0_2 = arith.constant 0 : index
    %1 = vector.load %arg2[%c0_1, %c0_2] : memref<8x128xf32, #tpu.memory_space<vmem>>, vector<8x128xf32>
    %c0_3 = arith.constant 0 : index
    %c0_4 = arith.constant 0 : index
    %2 = vector.load %arg3[%c0_3, %c0_4] : memref<8x4xi32, #tpu.memory_space<vmem>>, vector<8x4xi32>
    %c0_5 = arith.constant 0 : index
    %c0_6 = arith.constant 0 : index
    %3 = vector.load %arg4[%c0_5, %c0_6] : memref<8x64xf32, #tpu.memory_space<vmem>>, vector<8x64xf32>
    %4 = tpu.iota {dimensions = array<i32: 1>} : vector<8x8xi32>
    %5 = vector.extract_strided_slice %2 {offsets = [0, 0], sizes = [8, 1], strides = [1, 1]} : vector<8x4xi32> to vector<8x1xi32>
    %6 = vector.broadcast %5 : vector<8x1xi32> to vector<8x8xi32>
    %7 = arith.cmpi eq, %4, %6 : vector<8x8xi32>
    %8 = arith.extui %7 : vector<8x8xi1> to vector<8x8xi32>
    %9 = arith.sitofp %8 : vector<8x8xi32> to vector<8x8xf32>
    %cst = arith.constant dense<0.000000e+00> : vector<8x64xf32>
    %10 = tpu.matmul %9, %3, %cst {dimension_numbers = #tpu.dot_dimension_numbers<[1], [0], [0], [1], [0, 0, 1, 1], [], []>, precision = #tpu.contract_precision<fp32>} : vector<8x8xf32>, vector<8x64xf32>, vector<8x64xf32> -> vector<8x64xf32>
    %11 = vector.extract_strided_slice %10 {offsets = [0, 0], sizes = [8, 32], strides = [1, 1]} : vector<8x64xf32> to vector<8x32xf32>
    %12 = vector.extract_strided_slice %10 {offsets = [0, 32], sizes = [8, 32], strides = [1, 1]} : vector<8x64xf32> to vector<8x32xf32>
    %13 = vector.extract_strided_slice %0 {offsets = [0, 0], sizes = [8, 32], strides = [1, 1]} : vector<8x128xf32> to vector<8x32xf32>
    %14 = vector.extract_strided_slice %1 {offsets = [0, 0], sizes = [8, 32], strides = [1, 1]} : vector<8x128xf32> to vector<8x32xf32>
    %15 = arith.mulf %13, %11 : vector<8x32xf32>
    %16 = arith.mulf %14, %12 : vector<8x32xf32>
    %17 = arith.addf %15, %16 : vector<8x32xf32>
    %cst_7 = arith.constant dense<0.000000e+00> : vector<8xf32>
    %18 = vector.multi_reduction <add>, %17, %cst_7 [1] : vector<8x32xf32> to vector<8xf32>
    %19 = vector.shape_cast %18 : vector<8xf32> to vector<8x1xf32>
    %20 = vector.extract_strided_slice %2 {offsets = [0, 1], sizes = [8, 1], strides = [1, 1]} : vector<8x4xi32> to vector<8x1xi32>
    %21 = vector.broadcast %20 : vector<8x1xi32> to vector<8x8xi32>
    %22 = arith.cmpi eq, %4, %21 : vector<8x8xi32>
    %23 = arith.extui %22 : vector<8x8xi1> to vector<8x8xi32>
    %24 = arith.sitofp %23 : vector<8x8xi32> to vector<8x8xf32>
    %cst_8 = arith.constant dense<0.000000e+00> : vector<8x64xf32>
    %25 = tpu.matmul %24, %3, %cst_8 {dimension_numbers = #tpu.dot_dimension_numbers<[1], [0], [0], [1], [0, 0, 1, 1], [], []>, precision = #tpu.contract_precision<fp32>} : vector<8x8xf32>, vector<8x64xf32>, vector<8x64xf32> -> vector<8x64xf32>
    %26 = vector.extract_strided_slice %25 {offsets = [0, 0], sizes = [8, 32], strides = [1, 1]} : vector<8x64xf32> to vector<8x32xf32>
    %27 = vector.extract_strided_slice %25 {offsets = [0, 32], sizes = [8, 32], strides = [1, 1]} : vector<8x64xf32> to vector<8x32xf32>
    %28 = vector.extract_strided_slice %0 {offsets = [0, 32], sizes = [8, 32], strides = [1, 1]} : vector<8x128xf32> to vector<8x32xf32>
    %29 = vector.extract_strided_slice %1 {offsets = [0, 32], sizes = [8, 32], strides = [1, 1]} : vector<8x128xf32> to vector<8x32xf32>
    %30 = arith.mulf %28, %26 : vector<8x32xf32>
    %31 = arith.mulf %29, %27 : vector<8x32xf32>
    %32 = arith.addf %30, %31 : vector<8x32xf32>
    %cst_9 = arith.constant dense<0.000000e+00> : vector<8xf32>
    %33 = vector.multi_reduction <add>, %32, %cst_9 [1] : vector<8x32xf32> to vector<8xf32>
    %34 = vector.shape_cast %33 : vector<8xf32> to vector<8x1xf32>
    %35 = vector.extract_strided_slice %2 {offsets = [0, 2], sizes = [8, 1], strides = [1, 1]} : vector<8x4xi32> to vector<8x1xi32>
    %36 = vector.broadcast %35 : vector<8x1xi32> to vector<8x8xi32>
    %37 = arith.cmpi eq, %4, %36 : vector<8x8xi32>
    %38 = arith.extui %37 : vector<8x8xi1> to vector<8x8xi32>
    %39 = arith.sitofp %38 : vector<8x8xi32> to vector<8x8xf32>
    %cst_10 = arith.constant dense<0.000000e+00> : vector<8x64xf32>
    %40 = tpu.matmul %39, %3, %cst_10 {dimension_numbers = #tpu.dot_dimension_numbers<[1], [0], [0], [1], [0, 0, 1, 1], [], []>, precision = #tpu.contract_precision<fp32>} : vector<8x8xf32>, vector<8x64xf32>, vector<8x64xf32> -> vector<8x64xf32>
    %41 = vector.extract_strided_slice %40 {offsets = [0, 0], sizes = [8, 32], strides = [1, 1]} : vector<8x64xf32> to vector<8x32xf32>
    %42 = vector.extract_strided_slice %40 {offsets = [0, 32], sizes = [8, 32], strides = [1, 1]} : vector<8x64xf32> to vector<8x32xf32>
    %43 = vector.extract_strided_slice %0 {offsets = [0, 64], sizes = [8, 32], strides = [1, 1]} : vector<8x128xf32> to vector<8x32xf32>
    %44 = vector.extract_strided_slice %1 {offsets = [0, 64], sizes = [8, 32], strides = [1, 1]} : vector<8x128xf32> to vector<8x32xf32>
    %45 = arith.mulf %43, %41 : vector<8x32xf32>
    %46 = arith.mulf %44, %42 : vector<8x32xf32>
    %47 = arith.addf %45, %46 : vector<8x32xf32>
    %cst_11 = arith.constant dense<0.000000e+00> : vector<8xf32>
    %48 = vector.multi_reduction <add>, %47, %cst_11 [1] : vector<8x32xf32> to vector<8xf32>
    %49 = vector.shape_cast %48 : vector<8xf32> to vector<8x1xf32>
    %50 = vector.extract_strided_slice %2 {offsets = [0, 3], sizes = [8, 1], strides = [1, 1]} : vector<8x4xi32> to vector<8x1xi32>
    %51 = vector.broadcast %50 : vector<8x1xi32> to vector<8x8xi32>
    %52 = arith.cmpi eq, %4, %51 : vector<8x8xi32>
    %53 = arith.extui %52 : vector<8x8xi1> to vector<8x8xi32>
    %54 = arith.sitofp %53 : vector<8x8xi32> to vector<8x8xf32>
    %cst_12 = arith.constant dense<0.000000e+00> : vector<8x64xf32>
    %55 = tpu.matmul %54, %3, %cst_12 {dimension_numbers = #tpu.dot_dimension_numbers<[1], [0], [0], [1], [0, 0, 1, 1], [], []>, precision = #tpu.contract_precision<fp32>} : vector<8x8xf32>, vector<8x64xf32>, vector<8x64xf32> -> vector<8x64xf32>
    %56 = vector.extract_strided_slice %55 {offsets = [0, 0], sizes = [8, 32], strides = [1, 1]} : vector<8x64xf32> to vector<8x32xf32>
    %57 = vector.extract_strided_slice %55 {offsets = [0, 32], sizes = [8, 32], strides = [1, 1]} : vector<8x64xf32> to vector<8x32xf32>
    %58 = vector.extract_strided_slice %0 {offsets = [0, 96], sizes = [8, 32], strides = [1, 1]} : vector<8x128xf32> to vector<8x32xf32>
    %59 = vector.extract_strided_slice %1 {offsets = [0, 96], sizes = [8, 32], strides = [1, 1]} : vector<8x128xf32> to vector<8x32xf32>
    %60 = arith.mulf %58, %56 : vector<8x32xf32>
    %61 = arith.mulf %59, %57 : vector<8x32xf32>
    %62 = arith.addf %60, %61 : vector<8x32xf32>
    %cst_13 = arith.constant dense<0.000000e+00> : vector<8xf32>
    %63 = vector.multi_reduction <add>, %62, %cst_13 [1] : vector<8x32xf32> to vector<8xf32>
    %64 = vector.shape_cast %63 : vector<8xf32> to vector<8x1xf32>
    %65 = tpu.concatenate %19, %34, %49, %64 in 1 : vector<8x1xf32>, vector<8x1xf32>, vector<8x1xf32>, vector<8x1xf32> -> vector<8x4xf32>
    %c0_14 = arith.constant 0 : index
    %c0_15 = arith.constant 0 : index
    %66 = vector.load %arg5[%c0_14, %c0_15] : memref<8x4xf32, #tpu.memory_space<vmem>>, vector<8x4xf32>
    tpu.vector_store %arg5[%c0_14, %c0_15], %65 {strides = array<i32>} : memref<8x4xf32, #tpu.memory_space<vmem>>, vector<8x4xf32>,
    return
  }
  func.func @transform_0(%arg0: i32) -> (i32, i32) {
    %c0_i32 = arith.constant 0 : i32
    %c0_i32_0 = arith.constant 0 : i32
    return %arg0, %c0_i32 : i32, i32
  }
  func.func @transform_1(%arg0: i32) -> (i32, i32) {
    %c0_i32 = arith.constant 0 : i32
    %c0_i32_0 = arith.constant 0 : i32
    return %arg0, %c0_i32 : i32, i32
  }
  func.func @transform_2(%arg0: i32) -> (i32, i32) {
    %c0_i32 = arith.constant 0 : i32
    %c0_i32_0 = arith.constant 0 : i32
    return %arg0, %c0_i32 : i32, i32
  }
  func.func @transform_3(%arg0: i32) -> (i32, i32) {
    %c0_i32 = arith.constant 0 : i32
    %c0_i32_0 = arith.constant 0 : i32
    %c0_i32_1 = arith.constant 0 : i32
    return %c0_i32, %c0_i32_0 : i32, i32
  }
  func.func @transform_4(%arg0: i32) -> (i32, i32) {
    %c0_i32 = arith.constant 0 : i32
    %c0_i32_0 = arith.constant 0 : i32
    return %arg0, %c0_i32 : i32, i32
  }
}

</mosaic_0001>

<llo_original>
// kernel: e_score.1
$region0: #{e_score.1}
  #allocation0 [shape = 'u32[]', space=smem, size = 0x4, offset = 0x4, fixed_abs, tag = 'smem constant byte address 0x4 - core index']
  #allocation1 [shape = 'u32[144,128]{1,0:T(1,128)}', space=vmem, size = 0x12000, scoped, tag = 'internal scratch']
  %s0 = inlined_call_operand.vmem [shape: f32[8,128], index: 0, kind: input, shape index: {}]
  %s1 = inlined_call_operand.vmem [shape: f32[8,128], index: 1, kind: input, shape index: {}]
  %s2 = inlined_call_operand.vmem [shape: s32[8,4], index: 2, kind: input, shape index: {}]
  %s3 = inlined_call_operand.vmem [shape: f32[8,64], index: 3, kind: input, shape index: {}]
  %s4 = inlined_call_operand.vmem [shape: f32[8,4], index: 4, kind: output, shape index: {}]
  %s5 = sld [smem:[#allocation0]]
  $region26: #{e_score.1} parent=0
    _
  %s7 = ssub.s32 1, %s5
  %s8 = scalar_select 0, %s7, %s5
  // Predicated region
  $region2: #{e_score.1} parent=0 // pred_check
    _
  $region3: #{e_score.1} parent=0 // pred_check_branch
    %10 = sbr.rel (0) target = $region5
  $region4: #{e_score.1} parent=0 // pred_region
    _
  $region5: #{e_score.1} parent=0 // pred_fallthru
    _
  // Predicated region
  $region6: #{e_score.1} parent=0 // pred_check
    _
  $region7: #{e_score.1} parent=0 // pred_check_branch
    %12 = sbr.rel (0) target = $region9
  $region8: #{e_score.1} parent=0 // pred_region
    _
  $region9: #{e_score.1} parent=0 // pred_fallthru
    _
  // Predicated region
  $region10: #{e_score.1} parent=0 // pred_check
    _
  $region11: #{e_score.1} parent=0 // pred_check_branch
    %14 = sbr.rel (0) target = $region13
  $region12: #{e_score.1} parent=0 // pred_region
    _
  $region13: #{e_score.1} parent=0 // pred_fallthru
    _
  // Predicated region
  $region14: #{e_score.1} parent=0 // pred_check
    _
  $region15: #{e_score.1} parent=0 // pred_check_branch
    %16 = sbr.rel (0) target = $region17
  $region16: #{e_score.1} parent=0 // pred_region
    _
  $region17: #{e_score.1} parent=0 // pred_fallthru
    _
  %v17 = vld [vmem:[%s0] sm:$0xff]
  %v18 = vld [vmem:[%s1] sm:$0xff]
  %v19 = vld [vmem:[%s2] sm:$0xff]
  %v20 = vld [vmem:[%s3] sm:$0xff]
  %v21 = vlaneseq
  %v22 = vand.u32 %v21, 127
  %23 = vset.pattern.permute.xlu0 0
  %24 = vperm.xlu0 %23, %v19
  %v25 = vpop.permute.xlu0 %24
  %vm26 = vcmp.eq.s32.totalorder %v22, %v25
  %v27 = vsel %vm26, 1, 0
  %v28 = vcvt.s32.f32 %v27
  %vm29 = vcmask 64512
  %v31 = vsel %vm29, %v28, 0
  %33 = vmatprep.subr.mxu0 0.0
  %v34 = vand.u32 %v20, 4294901760
  %35 = vmatpush1.msra.mxu0 %v34
  %36 = vmatprep.subr.mxu0 0.0
  %37 = vmatpush1.msra.mxu0 0.0
  %38 = vmatprep.subr.mxu0 0.0
  %39 = vmatpush1.msra.mxu0 0.0
  %40 = vmatprep.subr.mxu0 0.0
  %41 = vmatpush1.msra.mxu0 0.0
  %42 = vmatprep.subr.mxu0 0.0
  %43 = vmatpush1.msra.mxu0 0.0
  %44 = vmatprep.subr.mxu0 0.0
  %45 = vmatpush1.msra.mxu0 0.0
  %46 = vmatprep.subr.mxu0 0.0
  %47 = vmatpush1.msra.mxu0 0.0
  %48 = vmatprep.subr.mxu0 0.0
  %49 = vmatpush1.msra.mxu0 0.0
  %50 = vmatprep.subr.mxu0 0.0
  %51 = vmatpush1.msra.mxu0 0.0
  %52 = vmatprep.subr.mxu0 0.0
  %53 = vmatpush1.msra.mxu0 0.0
  %54 = vmatprep.subr.mxu0 0.0
  %55 = vmatpush1.msra.mxu0 0.0
  %56 = vmatprep.subr.mxu0 0.0
  %57 = vmatpush1.msra.mxu0 0.0
  %58 = vmatprep.subr.mxu0 0.0
  %59 = vmatpush1.msra.mxu0 0.0
  %60 = vmatprep.subr.mxu0 0.0
  %61 = vmatpush1.msra.mxu0 0.0
  %62 = vmatprep.subr.mxu0 0.0
  %63 = vmatpush1.msra.mxu0 0.0
  %64 = vmatprep.subr.mxu0 0.0
  %65 = vmatpush1.msra.mxu0 0.0
  %66 = vmatprep.subr.mxu0 0.0
  %67 = vmatpush1.msra.mxu0 0.0
  %68 = vmatprep.subr.mxu0 0.0
  %69 = vmatpush1.msra.mxu0 0.0
  %70 = vmatprep.subr.mxu0 0.0
  %71 = vmatpush1.msra.mxu0 0.0
  %72 = vmatprep.subr.mxu0 0.0
  %73 = vmatpush1.msra.mxu0 0.0
  %74 = vmatprep.subr.mxu0 0.0
  %75 = vmatpush1.msra.mxu0 0.0
  %76 = vmatprep.subr.mxu0 0.0
  %77 = vmatpush1.msra.mxu0 0.0
  %78 = vmatprep.subr.mxu0 0.0
  %79 = vmatpush1.msra.mxu0 0.0
  %80 = vmatprep.subr.mxu0 0.0
  %81 = vmatpush1.msra.mxu0 0.0
  %82 = vmatprep.subr.mxu0 0.0
  %83 = vmatpush1.msra.mxu0 0.0
  %84 = vmatprep.subr.mxu0 0.0
  %85 = vmatpush1.msra.mxu0 0.0
  %86 = vmatprep.subr.mxu0 0.0
  %87 = vmatpush1.msra.mxu0 0.0
  %88 = vmatprep.subr.mxu0 0.0
  %89 = vmatpush1.msra.mxu0 0.0
  %90 = vmatprep.subr.mxu0 0.0
  %91 = vmatpush1.msra.mxu0 0.0
  %92 = vmatprep.subr.mxu0 0.0
  %93 = vmatpush1.msra.mxu0 0.0
  %94 = vmatprep.subr.mxu0 0.0
  %95 = vmatpush1.msra.mxu0 0.0
  %96 = vmatprep.subr.mxu0 0.0
  %97 = vmatpush1.msra.mxu0 0.0
  %98 = vmatprep.mubr.f32.mxu0 0.0
  %v99 = vand.u32 %v31, 4294901760
  %v100 = vsub.f32 %v31, %v99
  %v101 = vand.u32 %v100, 4294901760
  %v102 = vsub.f32 %v100, %v101
  %v103 = vand.u32 %v102, 4294901760
  %104 = vmatmul.mubr.f32.gmra.mrb[0].mxu0 %v103
  %v105 = vpop.f32.mrb[0].mxu0
  %v106 = vadd.f32 0.0, %v105
  %v107 = vpop.f32.mrb[0].mxu0
  %108 = vdwg.mxu0
  %109 = vmatprep.subr.mxu0 0.0
  %v110 = vand.u32 %v20, 4294901760
  %v111 = vsub.f32 %v20, %v110
  %v112 = vand.u32 %v111, 4294901760
  %v113 = vsub.f32 %v111, %v112
  %v114 = vand.u32 %v113, 4294901760
  %115 = vmatpush1.msra.mxu0 %v114
  %116 = vmatprep.subr.mxu0 0.0
  %117 = vmatpush1.msra.mxu0 0.0
  %118 = vmatprep.subr.mxu0 0.0
  %119 = vmatpush1.msra.mxu0 0.0
  %120 = vmatprep.subr.mxu0 0.0
  %121 = vmatpush1.msra.mxu0 0.0
  %122 = vmatprep.subr.mxu0 0.0
  %123 = vmatpush1.msra.mxu0 0.0
  %124 = vmatprep.subr.mxu0 0.0
  %125 = vmatpush1.msra.mxu0 0.0
  %126 = vmatprep.subr.mxu0 0.0
  %127 = vmatpush1.msra.mxu0 0.0
  %128 = vmatprep.subr.mxu0 0.0
  %129 = vmatpush1.msra.mxu0 0.0
  %130 = vmatprep.subr.mxu0 0.0
  %131 = vmatpush1.msra.mxu0 0.0
  %132 = vmatprep.subr.mxu0 0.0
  %133 = vmatpush1.msra.mxu0 0.0
  %134 = vmatprep.subr.mxu0 0.0
  %135 = vmatpush1.msra.mxu0 0.0
  %136 = vmatprep.subr.mxu0 0.0
  %137 = vmatpush1.msra.mxu0 0.0
  %138 = vmatprep.subr.mxu0 0.0
  %139 = vmatpush1.msra.mxu0 0.0
  %140 = vmatprep.subr.mxu0 0.0
  %141 = vmatpush1.msra.mxu0 0.0
  %142 = vmatprep.subr.mxu0 0.0
  %143 = vmatpush1.msra.mxu0 0.0
  %144 = vmatprep.subr.mxu0 0.0
  %145 = vmatpush1.msra.mxu0 0.0
  %146 = vmatprep.subr.mxu0 0.0
  %147 = vmatpush1.msra.mxu0 0.0
  %148 = vmatprep.subr.mxu0 0.0
  %149 = vmatpush1.msra.mxu0 0.0
  %150 = vmatprep.subr.mxu0 0.0
  %151 = vmatpush1.msra.mxu0 0.0
  %152 = vmatprep.subr.mxu0 0.0
  %153 = vmatpush1.msra.mxu0 0.0
  %154 = vmatprep.subr.mxu0 0.0
  %155 = vmatpush1.msra.mxu0 0.0
  %156 = vmatprep.subr.mxu0 0.0
  %157 = vmatpush1.msra.mxu0 0.0
  %158 = vmatprep.subr.mxu0 0.0
  %159 = vmatpush1.msra.mxu0 0.0
  %160 = vmatprep.subr.mxu0 0.0
  %161 = vmatpush1.msra.mxu0 0.0
  %162 = vmatprep.subr.mxu0 0.0
  %163 = vmatpush1.msra.mxu0 0.0
  %164 = vmatprep.subr.mxu0 0.0
  %165 = vmatpush1.msra.mxu0 0.0
  %166 = vmatprep.subr.mxu0 0.0
  %167 = vmatpush1.msra.mxu0 0.0
  %168 = vmatprep.subr.mxu0 0.0
  %169 = vmatpush1.msra.mxu0 0.0
  %170 = vmatprep.subr.mxu0 0.0
  %171 = vmatpush1.msra.mxu0 0.0
  %172 = vmatprep.subr.mxu0 0.0
  %173 = vmatpush1.msra.mxu0 0.0
  %174 = vmatprep.subr.mxu0 0.0
  %175 = vmatpush1.msra.mxu0 0.0
  %176 = vmatprep.subr.mxu0 0.0
  %177 = vmatpush1.msra.mxu0 0.0
  %178 = vmatprep.mubr.f32.mxu0 0.0
  %v179 = vand.u32 %v31, 4294901760
  %180 = vmatmul.mubr.f32.gmra.mrb[0].mxu0 %v179
  %v181 = vpop.f32.mrb[0].mxu0
  %v182 = vadd.f32 %v106, %v181
  %v183 = vpop.f32.mrb[0].mxu0
  %184 = vdwg.mxu0
  %185 = vmatprep.subr.mxu0 0.0
  %v186 = vand.u32 %v20, 4294901760
  %v187 = vsub.f32 %v20, %v186
  %188 = vmatpush1.msra.mxu0 %v187
  %189 = vmatprep.subr.mxu0 0.0
  %190 = vmatpush1.msra.mxu0 0.0
  %191 = vmatprep.subr.mxu0 0.0
  %192 = vmatpush1.msra.mxu0 0.0
  %193 = vmatprep.subr.mxu0 0.0
  %194 = vmatpush1.msra.mxu0 0.0
  %195 = vmatprep.subr.mxu0 0.0
  %196 = vmatpush1.msra.mxu0 0.0
  %197 = vmatprep.subr.mxu0 0.0
  %198 = vmatpush1.msra.mxu0 0.0
  %199 = vmatprep.subr.mxu0 0.0
  %200 = vmatpush1.msra.mxu0 0.0
  %201 = vmatprep.subr.mxu0 0.0
  %202 = vmatpush1.msra.mxu0 0.0
  %203 = vmatprep.subr.mxu0 0.0
  %204 = vmatpush1.msra.mxu0 0.0
  %205 = vmatprep.subr.mxu0 0.0
  %206 = vmatpush1.msra.mxu0 0.0
  %207 = vmatprep.subr.mxu0 0.0
  %208 = vmatpush1.msra.mxu0 0.0
  %209 = vmatprep.subr.mxu0 0.0
  %210 = vmatpush1.msra.mxu0 0.0
  %211 = vmatprep.subr.mxu0 0.0
  %212 = vmatpush1.msra.mxu0 0.0
  %213 = vmatprep.subr.mxu0 0.0
  %214 = vmatpush1.msra.mxu0 0.0
  %215 = vmatprep.subr.mxu0 0.0
  %216 = vmatpush1.msra.mxu0 0.0
  %217 = vmatprep.subr.mxu0 0.0
  %218 = vmatpush1.msra.mxu0 0.0
  %219 = vmatprep.subr.mxu0 0.0
  %220 = vmatpush1.msra.mxu0 0.0
  %221 = vmatprep.subr.mxu0 0.0
  %222 = vmatpush1.msra.mxu0 0.0
  %223 = vmatprep.subr.mxu0 0.0
  %224 = vmatpush1.msra.mxu0 0.0
  %225 = vmatprep.subr.mxu0 0.0
  %226 = vmatpush1.msra.mxu0 0.0
  %227 = vmatprep.subr.mxu0 0.0
  %228 = vmatpush1.msra.mxu0 0.0
  %229 = vmatprep.subr.mxu0 0.0
  %230 = vmatpush1.msra.mxu0 0.0
  %231 = vmatprep.subr.mxu0 0.0
  %232 = vmatpush1.msra.mxu0 0.0
  %233 = vmatprep.subr.mxu0 0.0
  %234 = vmatpush1.msra.mxu0 0.0
  %235 = vmatprep.subr.mxu0 0.0
  %236 = vmatpush1.msra.mxu0 0.0
  %237 = vmatprep.subr.mxu0 0.0
  %238 = vmatpush1.msra.mxu0 0.0
  %239 = vmatprep.subr.mxu0 0.0
  %240 = vmatpush1.msra.mxu0 0.0
  %241 = vmatprep.subr.mxu0 0.0
  %242 = vmatpush1.msra.mxu0 0.0
  %243 = vmatprep.subr.mxu0 0.0
  %244 = vmatpush1.msra.mxu0 0.0
  %245 = vmatprep.subr.mxu0 0.0
  %246 = vmatpush1.msra.mxu0 0.0
  %247 = vmatprep.subr.mxu0 0.0
  %248 = vmatpush1.msra.mxu0 0.0
  %249 = vmatprep.subr.mxu0 0.0
  %250 = vmatpush1.msra.mxu0 0.0
  %251 = vmatprep.mubr.f32.mxu0 0.0
  %v252 = vand.u32 %v31, 4294901760
  %v253 = vsub.f32 %v31, %v252
  %254 = vmatmul.mubr.f32.gmra.mrb[0].mxu0 %v253
  %v255 = vpop.f32.mrb[0].mxu0
  %v256 = vadd.f32 %v182, %v255
  %v257 = vpop.f32.mrb[0].mxu0
  %258 = vdwg.mxu0
  %259 = vmatprep.subr.mxu0 0.0
  %v260 = vand.u32 %v20, 4294901760
  %261 = vmatpush1.msra.mxu0 %v260
  %262 = vmatprep.subr.mxu0 0.0
  %263 = vmatpush1.msra.mxu0 0.0
  %264 = vmatprep.subr.mxu0 0.0
  %265 = vmatpush1.msra.mxu0 0.0
  %266 = vmatprep.subr.mxu0 0.0
  %267 = vmatpush1.msra.mxu0 0.0
  %268 = vmatprep.subr.mxu0 0.0
  %269 = vmatpush1.msra.mxu0 0.0
  %270 = vmatprep.subr.mxu0 0.0
  %271 = vmatpush1.msra.mxu0 0.0
  %272 = vmatprep.subr.mxu0 0.0
  %273 = vmatpush1.msra.mxu0 0.0
  %274 = vmatprep.subr.mxu0 0.0
  %275 = vmatpush1.msra.mxu0 0.0
  %276 = vmatprep.subr.mxu0 0.0
  %277 = vmatpush1.msra.mxu0 0.0
  %278 = vmatprep.subr.mxu0 0.0
  %279 = vmatpush1.msra.mxu0 0.0
  %280 = vmatprep.subr.mxu0 0.0
  %281 = vmatpush1.msra.mxu0 0.0
  %282 = vmatprep.subr.mxu0 0.0
  %283 = vmatpush1.msra.mxu0 0.0
  %284 = vmatprep.subr.mxu0 0.0
  %285 = vmatpush1.msra.mxu0 0.0
  %286 = vmatprep.subr.mxu0 0.0
  %287 = vmatpush1.msra.mxu0 0.0
  %288 = vmatprep.subr.mxu0 0.0
  %289 = vmatpush1.msra.mxu0 0.0
  %290 = vmatprep.subr.mxu0 0.0
  %291 = vmatpush1.msra.mxu0 0.0
  %292 = vmatprep.subr.mxu0 0.0
  %293 = vmatpush1.msra.mxu0 0.0
  %294 = vmatprep.subr.mxu0 0.0
  %295 = vmatpush1.msra.mxu0 0.0
  %296 = vmatprep.subr.mxu0 0.0
  %297 = vmatpush1.msra.mxu0 0.0
  %298 = vmatprep.subr.mxu0 0.0
  %299 = vmatpush1.msra.mxu0 0.0
  %300 = vmatprep.subr.mxu0 0.0
  %301 = vmatpush1.msra.mxu0 0.0
  %302 = vmatprep.subr.mxu0 0.0
  %303 = vmatpush1.msra.mxu0 0.0
  %304 = vmatprep.subr.mxu0 0.0
  %305 = vmatpush1.msra.mxu0 0.0
  %306 = vmatprep.subr.mxu0 0.0
  %307 = vmatpush1.msra.mxu0 0.0
  %308 = vmatprep.subr.mxu0 0.0
  %309 = vmatpush1.msra.mxu0 0.0
  %310 = vmatprep.subr.mxu0 0.0
  %311 = vmatpush1.msra.mxu0 0.0
  %312 = vmatprep.subr.mxu0 0.0
  %313 = vmatpush1.msra.mxu0 0.0
  %314 = vmatprep.subr.mxu0 0.0
  %315 = vmatpush1.msra.mxu0 0.0
  %316 = vmatprep.subr.mxu0 0.0
  %317 = vmatpush1.msra.mxu0 0.0
  %318 = vmatprep.subr.mxu0 0.0
  %319 = vmatpush1.msra.mxu0 0.0
  %320 = vmatprep.subr.mxu0 0.0
  %321 = vmatpush1.msra.mxu0 0.0
  %322 = vmatprep.subr.mxu0 0.0
  %323 = vmatpush1.msra.mxu0 0.0
  %324 = vmatprep.mubr.f32.mxu0 0.0
  %v325 = vand.u32 %v31, 4294901760
  %v326 = vsub.f32 %v31, %v325
  %v327 = vand.u32 %v326, 4294901760
  %328 = vmatmul.mubr.f32.gmra.mrb[0].mxu0 %v327
  %v329 = vpop.f32.mrb[0].mxu0
  %v330 = vadd.f32 %v256, %v329
  %v331 = vpop.f32.mrb[0].mxu0
  %332 = vdwg.mxu0
  %333 = vmatprep.subr.mxu0 0.0
  %v334 = vand.u32 %v20, 4294901760
  %v335 = vsub.f32 %v20, %v334
  %v336 = vand.u32 %v335, 4294901760
  %337 = vmatpush1.msra.mxu0 %v336
  %338 = vmatprep.subr.mxu0 0.0
  %339 = vmatpush1.msra.mxu0 0.0
  %340 = vmatprep.subr.mxu0 0.0
  %341 = vmatpush1.msra.mxu0 0.0
  %342 = vmatprep.subr.mxu0 0.0
  %343 = vmatpush1.msra.mxu0 0.0
  %344 = vmatprep.subr.mxu0 0.0
  %345 = vmatpush1.msra.mxu0 0.0
  %346 = vmatprep.subr.mxu0 0.0
  %347 = vmatpush1.msra.mxu0 0.0
  %348 = vmatprep.subr.mxu0 0.0
  %349 = vmatpush1.msra.mxu0 0.0
  %350 = vmatprep.subr.mxu0 0.0
  %351 = vmatpush1.msra.mxu0 0.0
  %352 = vmatprep.subr.mxu0 0.0
  %353 = vmatpush1.msra.mxu0 0.0
  %354 = vmatprep.subr.mxu0 0.0
  %355 = vmatpush1.msra.mxu0 0.0
  %356 = vmatprep.subr.mxu0 0.0
  %357 = vmatpush1.msra.mxu0 0.0
  %358 = vmatprep.subr.mxu0 0.0
  %359 = vmatpush1.msra.mxu0 0.0
  %360 = vmatprep.subr.mxu0 0.0
  %361 = vmatpush1.msra.mxu0 0.0
  %362 = vmatprep.subr.mxu0 0.0
  %363 = vmatpush1.msra.mxu0 0.0
  %364 = vmatprep.subr.mxu0 0.0
  %365 = vmatpush1.msra.mxu0 0.0
  %366 = vmatprep.subr.mxu0 0.0
  %367 = vmatpush1.msra.mxu0 0.0
  %368 = vmatprep.subr.mxu0 0.0
  %369 = vmatpush1.msra.mxu0 0.0
  %370 = vmatprep.subr.mxu0 0.0
  %371 = vmatpush1.msra.mxu0 0.0
  %372 = vmatprep.subr.mxu0 0.0
  %373 = vmatpush1.msra.mxu0 0.0
  %374 = vmatprep.subr.mxu0 0.0
  %375 = vmatpush1.msra.mxu0 0.0
  %376 = vmatprep.subr.mxu0 0.0
  %377 = vmatpush1.msra.mxu0 0.0
  %378 = vmatprep.subr.mxu0 0.0
  %379 = vmatpush1.msra.mxu0 0.0
  %380 = vmatprep.subr.mxu0 0.0
  %381 = vmatpush1.msra.mxu0 0.0
  %382 = vmatprep.subr.mxu0 0.0
  %383 = vmatpush1.msra.mxu0 0.0
  %384 = vmatprep.subr.mxu0 0.0
  %385 = vmatpush1.msra.mxu0 0.0
  %386 = vmatprep.subr.mxu0 0.0
  %387 = vmatpush1.msra.mxu0 0.0
  %388 = vmatprep.subr.mxu0 0.0
  %389 = vmatpush1.msra.mxu0 0.0
  %390 = vmatprep.subr.mxu0 0.0
  %391 = vmatpush1.msra.mxu0 0.0
  %392 = vmatprep.subr.mxu0 0.0
  %393 = vmatpush1.msra.mxu0 0.0
  %394 = vmatprep.subr.mxu0 0.0
  %395 = vmatpush1.msra.mxu0 0.0
  %396 = vmatprep.subr.mxu0 0.0
  %397 = vmatpush1.msra.mxu0 0.0
  %398 = vmatprep.subr.mxu0 0.0
  %399 = vmatpush1.msra.mxu0 0.0
  %400 = vmatprep.mubr.f32.mxu0 0.0
  %v401 = vand.u32 %v31, 4294901760
  %402 = vmatmul.mubr.f32.gmra.mrb[0].mxu0 %v401
  %v403 = vpop.f32.mrb[0].mxu0
  %v404 = vadd.f32 %v330, %v403
  %v405 = vpop.f32.mrb[0].mxu0
  %406 = vdwg.mxu0
  %407 = vmatprep.subr.mxu0 0.0
  %v408 = vand.u32 %v20, 4294901760
  %409 = vmatpush1.msra.mxu0 %v408
  %410 = vmatprep.subr.mxu0 0.0
  %411 = vmatpush1.msra.mxu0 0.0
  %412 = vmatprep.subr.mxu0 0.0
  %413 = vmatpush1.msra.mxu0 0.0
  %414 = vmatprep.subr.mxu0 0.0
  %415 = vmatpush1.msra.mxu0 0.0
  %416 = vmatprep.subr.mxu0 0.0
  %417 = vmatpush1.msra.mxu0 0.0
  %418 = vmatprep.subr.mxu0 0.0
  %419 = vmatpush1.msra.mxu0 0.0
  %420 = vmatprep.subr.mxu0 0.0
  %421 = vmatpush1.msra.mxu0 0.0
  %422 = vmatprep.subr.mxu0 0.0
  %423 = vmatpush1.msra.mxu0 0.0
  %424 = vmatprep.subr.mxu0 0.0
  %425 = vmatpush1.msra.mxu0 0.0
  %426 = vmatprep.subr.mxu0 0.0
  %427 = vmatpush1.msra.mxu0 0.0
  %428 = vmatprep.subr.mxu0 0.0
  %429 = vmatpush1.msra.mxu0 0.0
  %430 = vmatprep.subr.mxu0 0.0
  %431 = vmatpush1.msra.mxu0 0.0
  %432 = vmatprep.subr.mxu0 0.0
  %433 = vmatpush1.msra.mxu0 0.0
  %434 = vmatprep.subr.mxu0 0.0
  %435 = vmatpush1.msra.mxu0 0.0
  %436 = vmatprep.subr.mxu0 0.0
  %437 = vmatpush1.msra.mxu0 0.0
  %438 = vmatprep.subr.mxu0 0.0
  %439 = vmatpush1.msra.mxu0 0.0
  %440 = vmatprep.subr.mxu0 0.0
  %441 = vmatpush1.msra.mxu0 0.0
  %442 = vmatprep.subr.mxu0 0.0
  %443 = vmatpush1.msra.mxu0 0.0
  %444 = vmatprep.subr.mxu0 0.0
  %445 = vmatpush1.msra.mxu0 0.0
  %446 = vmatprep.subr.mxu0 0.0
  %447 = vmatpush1.msra.mxu0 0.0
  %448 = vmatprep.subr.mxu0 0.0
  %449 = vmatpush1.msra.mxu0 0.0
  %450 = vmatprep.subr.mxu0 0.0
  %451 = vmatpush1.msra.mxu0 0.0
  %452 = vmatprep.subr.mxu0 0.0
  %453 = vmatpush1.msra.mxu0 0.0
  %454 = vmatprep.subr.mxu0 0.0
  %455 = vmatpush1.msra.mxu0 0.0
  %456 = vmatprep.subr.mxu0 0.0
  %457 = vmatpush1.msra.mxu0 0.0
  %458 = vmatprep.subr.mxu0 0.0
  %459 = vmatpush1.msra.mxu0 0.0
  %460 = vmatprep.subr.mxu0 0.0
  %461 = vmatpush1.msra.mxu0 0.0
  %462 = vmatprep.subr.mxu0 0.0
  %463 = vmatpush1.msra.mxu0 0.0
  %464 = vmatprep.subr.mxu0 0.0
  %465 = vmatpush1.msra.mxu0 0.0
  %466 = vmatprep.subr.mxu0 0.0
  %467 = vmatpush1.msra.mxu0 0.0
  %468 = vmatprep.subr.mxu0 0.0
  %469 = vmatpush1.msra.mxu0 0.0
  %470 = vmatprep.subr.mxu0 0.0
  %471 = vmatpush1.msra.mxu0 0.0
  %472 = vmatprep.mubr.f32.mxu0 0.0
  %v473 = vand.u32 %v31, 4294901760
  %474 = vmatmul.mubr.f32.gmra.mrb[0].mxu0 %v473
  %v475 = vpop.f32.mrb[0].mxu0
  %v476 = vadd.f32 %v404, %v475
  %v477 = vpop.f32.mrb[0].mxu0
  %478 = vdwg.mxu0
  %v479 = vmul.f32 %v17, %v476
  %481 = vrot.lane.b32.xlu0 %v476, 96
  %v482 = vpop.permute.xlu0 %481
  %v484 = vmul.f32 %v18, %v482
  %v485 = vadd.f32 %v479, %v484
  %vm486 = vcmask 261120
  %v487 = vsel %vm486, %v485, 0.0
  %488 = vadd.xlane.f32.xlu0 %v487
  %v489 = vpop.xlane.xlu0 %488
  %490 = vset.pattern.permute.xlu0 1
  %491 = vperm.xlu0 %490, %v19
  %v492 = vpop.permute.xlu0 %491
  %vm493 = vcmp.eq.s32.totalorder %v22, %v492
  %v494 = vsel %vm493, 1, 0
  %v495 = vcvt.s32.f32 %v494
  %v497 = vsel %vm29, %v495, 0
  %499 = vmatprep.subr.mxu0 0.0
  %v500 = vand.u32 %v20, 4294901760
  %501 = vmatpush1.msra.mxu0 %v500
  %502 = vmatprep.subr.mxu0 0.0
  %503 = vmatpush1.msra.mxu0 0.0
  %504 = vmatprep.subr.mxu0 0.0
  %505 = vmatpush1.msra.mxu0 0.0
  %506 = vmatprep.subr.mxu0 0.0
  %507 = vmatpush1.msra.mxu0 0.0
  %508 = vmatprep.subr.mxu0 0.0
  %509 = vmatpush1.msra.mxu0 0.0
  %510 = vmatprep.subr.mxu0 0.0
  %511 = vmatpush1.msra.mxu0 0.0
  %512 = vmatprep.subr.mxu0 0.0
  %513 = vmatpush1.msra.mxu0 0.0
  %514 = vmatprep.subr.mxu0 0.0
  %515 = vmatpush1.msra.mxu0 0.0
  %516 = vmatprep.subr.mxu0 0.0
  %517 = vmatpush1.msra.mxu0 0.0
  %518 = vmatprep.subr.mxu0 0.0
  %519 = vmatpush1.msra.mxu0 0.0
  %520 = vmatprep.subr.mxu0 0.0
  %521 = vmatpush1.msra.mxu0 0.0
  %522 = vmatprep.subr.mxu0 0.0
  %523 = vmatpush1.msra.mxu0 0.0
  %524 = vmatprep.subr.mxu0 0.0
  %525 = vmatpush1.msra.mxu0 0.0
  %526 = vmatprep.subr.mxu0 0.0
  %527 = vmatpush1.msra.mxu0 0.0
  %528 = vmatprep.subr.mxu0 0.0
  %529 = vmatpush1.msra.mxu0 0.0
  %530 = vmatprep.subr.mxu0 0.0
  %531 = vmatpush1.msra.mxu0 0.0
  %532 = vmatprep.subr.mxu0 0.0
  %533 = vmatpush1.msra.mxu0 0.0
  %534 = vmatprep.subr.mxu0 0.0
  %535 = vmatpush1.msra.mxu0 0.0
  %536 = vmatprep.subr.mxu0 0.0
  %537 = vmatpush1.msra.mxu0 0.0
  %538 = vmatprep.subr.mxu0 0.0
  %539 = vmatpush1.msra.mxu0 0.0
  %540 = vmatprep.subr.mxu0 0.0
  %541 = vmatpush1.msra.mxu0 0.0
  %542 = vmatprep.subr.mxu0 0.0
  %543 = vmatpush1.msra.mxu0 0.0
  %544 = vmatprep.subr.mxu0 0.0
  %545 = vmatpush1.msra.mxu0 0.0
  %546 = vmatprep.subr.mxu0 0.0
  %547 = vmatpush1.msra.mxu0 0.0
  %548 = vmatprep.subr.mxu0 0.0
  %549 = vmatpush1.msra.mxu0 0.0
  %550 = vmatprep.subr.mxu0 0.0
  %551 = vmatpush1.msra.mxu0 0.0
  %552 = vmatprep.subr.mxu0 0.0
  %553 = vmatpush1.msra.mxu0 0.0
  %554 = vmatprep.subr.mxu0 0.0
  %555 = vmatpush1.msra.mxu0 0.0
  %556 = vmatprep.subr.mxu0 0.0
  %557 = vmatpush1.msra.mxu0 0.0
  %558 = vmatprep.subr.mxu0 0.0
  %559 = vmatpush1.msra.mxu0 0.0
  %560 = vmatprep.subr.mxu0 0.0
  %561 = vmatpush1.msra.mxu0 0.0
  %562 = vmatprep.subr.mxu0 0.0
  %563 = vmatpush1.msra.mxu0 0.0
  %564 = vmatprep.mubr.f32.mxu0 0.0
  %v565 = vand.u32 %v497, 4294901760
  %v566 = vsub.f32 %v497, %v565
  %v567 = vand.u32 %v566, 4294901760
  %v568 = vsub.f32 %v566, %v567
  %v569 = vand.u32 %v568, 4294901760
  %570 = vmatmul.mubr.f32.gmra.mrb[0].mxu0 %v569
  %v571 = vpop.f32.mrb[0].mxu0
  %v572 = vadd.f32 0.0, %v571
  %v573 = vpop.f32.mrb[0].mxu0
  %574 = vdwg.mxu0
  %575 = vmatprep.subr.mxu0 0.0
  %v576 = vand.u32 %v20, 4294901760
  %v577 = vsub.f32 %v20, %v576
  %v578 = vand.u32 %v577, 4294901760
  %v579 = vsub.f32 %v577, %v578
  %v580 = vand.u32 %v579, 4294901760
  %581 = vmatpush1.msra.mxu0 %v580
  %582 = vmatprep.subr.mxu0 0.0
  %583 = vmatpush1.msra.mxu0 0.0
  %584 = vmatprep.subr.mxu0 0.0
  %585 = vmatpush1.msra.mxu0 0.0
  %586 = vmatprep.subr.mxu0 0.0
  %587 = vmatpush1.msra.mxu0 0.0
  %588 = vmatprep.subr.mxu0 0.0
  %589 = vmatpush1.msra.mxu0 0.0
  %590 = vmatprep.subr.mxu0 0.0
  %591 = vmatpush1.msra.mxu0 0.0
  %592 = vmatprep.subr.mxu0 0.0
  %593 = vmatpush1.msra.mxu0 0.0
  %594 = vmatprep.subr.mxu0 0.0
  %595 = vmatpush1.msra.mxu0 0.0
  %596 = vmatprep.subr.mxu0 0.0
  %597 = vmatpush1.msra.mxu0 0.0
  %598 = vmatprep.subr.mxu0 0.0
  %599 = vmatpush1.msra.mxu0 0.0
  %600 = vmatprep.subr.mxu0 0.0
  %601 = vmatpush1.msra.mxu0 0.0
  %602 = vmatprep.subr.mxu0 0.0
  %603 = vmatpush1.msra.mxu0 0.0
  %604 = vmatprep.subr.mxu0 0.0
  %605 = vmatpush1.msra.mxu0 0.0
  %606 = vmatprep.subr.mxu0 0.0
  %607 = vmatpush1.msra.mxu0 0.0
  %608 = vmatprep.subr.mxu0 0.0
  %609 = vmatpush1.msra.mxu0 0.0
  %610 = vmatprep.subr.mxu0 0.0
  %611 = vmatpush1.msra.mxu0 0.0
  %612 = vmatprep.subr.mxu0 0.0
  %613 = vmatpush1.msra.mxu0 0.0
  %614 = vmatprep.subr.mxu0 0.0
  %615 = vmatpush1.msra.mxu0 0.0
  %616 = vmatprep.subr.mxu0 0.0
  %617 = vmatpush1.msra.mxu0 0.0
  %618 = vmatprep.subr.mxu0 0.0
  %619 = vmatpush1.msra.mxu0 0.0
  %620 = vmatprep.subr.mxu0 0.0
  %621 = vmatpush1.msra.mxu0 0.0
  %622 = vmatprep.subr.mxu0 0.0
  %623 = vmatpush1.msra.mxu0 0.0
  %624 = vmatprep.subr.mxu0 0.0
  %625 = vmatpush1.msra.mxu0 0.0
  %626 = vmatprep.subr.mxu0 0.0
  %627 = vmatpush1.msra.mxu0 0.0
  %628 = vmatprep.subr.mxu0 0.0
  %629 = vmatpush1.msra.mxu0 0.0
  %630 = vmatprep.subr.mxu0 0.0
  %631 = vmatpush1.msra.mxu0 0.0
  %632 = vmatprep.subr.mxu0 0.0
  %633 = vmatpush1.msra.mxu0 0.0
  %634 = vmatprep.subr.mxu0 0.0
  %635 = vmatpush1.msra.mxu0 0.0
  %636 = vmatprep.subr.mxu0 0.0
  %637 = vmatpush1.msra.mxu0 0.0
  %638 = vmatprep.subr.mxu0 0.0
  %639 = vmatpush1.msra.mxu0 0.0
  %640 = vmatprep.subr.mxu0 0.0
  %641 = vmatpush1.msra.mxu0 0.0
  %642 = vmatprep.subr.mxu0 0.0
  %643 = vmatpush1.msra.mxu0 0.0
  %644 = vmatprep.mubr.f32.mxu0 0.0
  %v645 = vand.u32 %v497, 4294901760
  %646 = vmatmul.mubr.f32.gmra.mrb[0].mxu0 %v645
  %v647 = vpop.f32.mrb[0].mxu0
  %v648 = vadd.f32 %v572, %v647
  %v649 = vpop.f32.mrb[0].mxu0
  %650 = vdwg.mxu0
  %651 = vmatprep.subr.mxu0 0.0
  %v652 = vand.u32 %v20, 4294901760
  %v653 = vsub.f32 %v20, %v652
  %654 = vmatpush1.msra.mxu0 %v653
  %655 = vmatprep.subr.mxu0 0.0
  %656 = vmatpush1.msra.mxu0 0.0
  %657 = vmatprep.subr.mxu0 0.0
  %658 = vmatpush1.msra.mxu0 0.0
  %659 = vmatprep.subr.mxu0 0.0
  %660 = vmatpush1.msra.mxu0 0.0
  %661 = vmatprep.subr.mxu0 0.0
  %662 = vmatpush1.msra.mxu0 0.0
  %663 = vmatprep.subr.mxu0 0.0
  %664 = vmatpush1.msra.mxu0 0.0
  %665 = vmatprep.subr.mxu0 0.0
  %666 = vmatpush1.msra.mxu0 0.0
  %667 = vmatprep.subr.mxu0 0.0
  %668 = vmatpush1.msra.mxu0 0.0
  %669 = vmatprep.subr.mxu0 0.0
  %670 = vmatpush1.msra.mxu0 0.0
  %671 = vmatprep.subr.mxu0 0.0
  %672 = vmatpush1.msra.mxu0 0.0
  %673 = vmatprep.subr.mxu0 0.0
  %674 = vmatpush1.msra.mxu0 0.0
  %675 = vmatprep.subr.mxu0 0.0
  %676 = vmatpush1.msra.mxu0 0.0
  %677 = vmatprep.subr.mxu0 0.0
  %678 = vmatpush1.msra.mxu0 0.0
  %679 = vmatprep.subr.mxu0 0.0
  %680 = vmatpush1.msra.mxu0 0.0
  %681 = vmatprep.subr.mxu0 0.0
  %682 = vmatpush1.msra.mxu0 0.0
  %683 = vmatprep.subr.mxu0 0.0
  %684 = vmatpush1.msra.mxu0 0.0
  %685 = vmatprep.subr.mxu0 0.0
  %686 = vmatpush1.msra.mxu0 0.0
  %687 = vmatprep.subr.mxu0 0.0
  %688 = vmatpush1.msra.mxu0 0.0
  %689 = vmatprep.subr.mxu0 0.0
  %690 = vmatpush1.msra.mxu0 0.0
  %691 = vmatprep.subr.mxu0 0.0
  %692 = vmatpush1.msra.mxu0 0.0
  %693 = vmatprep.subr.mxu0 0.0
  %694 = vmatpush1.msra.mxu0 0.0
  %695 = vmatprep.subr.mxu0 0.0
  %696 = vmatpush1.msra.mxu0 0.0
  %697 = vmatprep.subr.mxu0 0.0
  %698 = vmatpush1.msra.mxu0 0.0
  %699 = vmatprep.subr.mxu0 0.0
  %700 = vmatpush1.msra.mxu0 0.0
  %701 = vmatprep.subr.mxu0 0.0
  %702 = vmatpush1.msra.mxu0 0.0
  %703 = vmatprep.subr.mxu0 0.0
  %704 = vmatpush1.msra.mxu0 0.0
  %705 = vmatprep.subr.mxu0 0.0
  %706 = vmatpush1.msra.mxu0 0.0
  %707 = vmatprep.subr.mxu0 0.0
  %708 = vmatpush1.msra.mxu0 0.0
  %709 = vmatprep.subr.mxu0 0.0
  %710 = vmatpush1.msra.mxu0 0.0
  %711 = vmatprep.subr.mxu0 0.0
  %712 = vmatpush1.msra.mxu0 0.0
  %713 = vmatprep.subr.mxu0 0.0
  %714 = vmatpush1.msra.mxu0 0.0
  %715 = vmatprep.subr.mxu0 0.0
  %716 = vmatpush1.msra.mxu0 0.0
  %717 = vmatprep.mubr.f32.mxu0 0.0
  %v718 = vand.u32 %v497, 4294901760
  %v719 = vsub.f32 %v497, %v718
  %720 = vmatmul.mubr.f32.gmra.mrb[0].mxu0 %v719
  %v721 = vpop.f32.mrb[0].mxu0
  %v722 = vadd.f32 %v648, %v721
  %v723 = vpop.f32.mrb[0].mxu0
  %724 = vdwg.mxu0
  %725 = vmatprep.subr.mxu0 0.0
  %v726 = vand.u32 %v20, 4294901760
  %727 = vmatpush1.msra.mxu0 %v726
  %728 = vmatprep.subr.mxu0 0.0
  %729 = vmatpush1.msra.mxu0 0.0
  %730 = vmatprep.subr.mxu0 0.0
  %731 = vmatpush1.msra.mxu0 0.0
  %732 = vmatprep.subr.mxu0 0.0
  %733 = vmatpush1.msra.mxu0 0.0
  %734 = vmatprep.subr.mxu0 0.0
  %735 = vmatpush1.msra.mxu0 0.0
  %736 = vmatprep.subr.mxu0 0.0
  %737 = vmatpush1.msra.mxu0 0.0
  %738 = vmatprep.subr.mxu0 0.0
  %739 = vmatpush1.msra.mxu0 0.0
  %740 = vmatprep.subr.mxu0 0.0
  %741 = vmatpush1.msra.mxu0 0.0
  %742 = vmatprep.subr.mxu0 0.0
  %743 = vmatpush1.msra.mxu0 0.0
  %744 = vmatprep.subr.mxu0 0.0
  %745 = vmatpush1.msra.mxu0 0.0
  %746 = vmatprep.subr.mxu0 0.0
  %747 = vmatpush1.msra.mxu0 0.0
  %748 = vmatprep.subr.mxu0 0.0
  %749 = vmatpush1.msra.mxu0 0.0
  %750 = vmatprep.subr.mxu0 0.0
  %751 = vmatpush1.msra.mxu0 0.0
  %752 = vmatprep.subr.mxu0 0.0
  %753 = vmatpush1.msra.mxu0 0.0
  %754 = vmatprep.subr.mxu0 0.0
  %755 = vmatpush1.msra.mxu0 0.0
  %756 = vmatprep.subr.mxu0 0.0
  %757 = vmatpush1.msra.mxu0 0.0
  %758 = vmatprep.subr.mxu0 0.0
  %759 = vmatpush1.msra.mxu0 0.0
  %760 = vmatprep.subr.mxu0 0.0
  %761 = vmatpush1.msra.mxu0 0.0
  %762 = vmatprep.subr.mxu0 0.0
  %763 = vmatpush1.msra.mxu0 0.0
  %764 = vmatprep.subr.mxu0 0.0
  %765 = vmatpush1.msra.mxu0 0.0
  %766 = vmatprep.subr.mxu0 0.0
  %767 = vmatpush1.msra.mxu0 0.0
  %768 = vmatprep.subr.mxu0 0.0
  %769 = vmatpush1.msra.mxu0 0.0
  %770 = vmatprep.subr.mxu0 0.0
  %771 = vmatpush1.msra.mxu0 0.0
  %772 = vmatprep.subr.mxu0 0.0
  %773 = vmatpush1.msra.mxu0 0.0
  %774 = vmatprep.subr.mxu0 0.0
  %775 = vmatpush1.msra.mxu0 0.0
  %776 = vmatprep.subr.mxu0 0.0
  %777 = vmatpush1.msra.mxu0 0.0
  %778 = vmatprep.subr.mxu0 0.0
  %779 = vmatpush1.msra.mxu0 0.0
  %780 = vmatprep.subr.mxu0 0.0
  %781 = vmatpush1.msra.mxu0 0.0
  %782 = vmatprep.subr.mxu0 0.0
  %783 = vmatpush1.msra.mxu0 0.0
  %784 = vmatprep.subr.mxu0 0.0
  %785 = vmatpush1.msra.mxu0 0.0
  %786 = vmatprep.subr.mxu0 0.0
  %787 = vmatpush1.msra.mxu0 0.0
  %788 = vmatprep.subr.mxu0 0.0
  %789 = vmatpush1.msra.mxu0 0.0
  %790 = vmatprep.mubr.f32.mxu0 0.0
  %v791 = vand.u32 %v497, 4294901760
  %v792 = vsub.f32 %v497, %v791
  %v793 = vand.u32 %v792, 4294901760
  %794 = vmatmul.mubr.f32.gmra.mrb[0].mxu0 %v793
  %v795 = vpop.f32.mrb[0].mxu0
  %v796 = vadd.f32 %v722, %v795
  %v797 = vpop.f32.mrb[0].mxu0
  %798 = vdwg.mxu0
  %799 = vmatprep.subr.mxu0 0.0
  %v800 = vand.u32 %v20, 4294901760
  %v801 = vsub.f32 %v20, %v800
  %v802 = vand.u32 %v801, 4294901760
  %803 = vmatpush1.msra.mxu0 %v802
  %804 = vmatprep.subr.mxu0 0.0
  %805 = vmatpush1.msra.mxu0 0.0
  %806 = vmatprep.subr.mxu0 0.0
  %807 = vmatpush1.msra.mxu0 0.0
  %808 = vmatprep.subr.mxu0 0.0
  %809 = vmatpush1.msra.mxu0 0.0
  %810 = vmatprep.subr.mxu0 0.0
  %811 = vmatpush1.msra.mxu0 0.0
  %812 = vmatprep.subr.mxu0 0.0
  %813 = vmatpush1.msra.mxu0 0.0
  %814 = vmatprep.subr.mxu0 0.0
  %815 = vmatpush1.msra.mxu0 0.0
  %816 = vmatprep.subr.mxu0 0.0
  %817 = vmatpush1.msra.mxu0 0.0
  %818 = vmatprep.subr.mxu0 0.0
  %819 = vmatpush1.msra.mxu0 0.0
  %820 = vmatprep.subr.mxu0 0.0
  %821 = vmatpush1.msra.mxu0 0.0
  %822 = vmatprep.subr.mxu0 0.0
  %823 = vmatpush1.msra.mxu0 0.0
  %824 = vmatprep.subr.mxu0 0.0
  %825 = vmatpush1.msra.mxu0 0.0
  %826 = vmatprep.subr.mxu0 0.0
  %827 = vmatpush1.msra.mxu0 0.0
  %828 = vmatprep.subr.mxu0 0.0
  %829 = vmatpush1.msra.mxu0 0.0
  %830 = vmatprep.subr.mxu0 0.0
  %831 = vmatpush1.msra.mxu0 0.0
  %832 = vmatprep.subr.mxu0 0.0
  %833 = vmatpush1.msra.mxu0 0.0
  %834 = vmatprep.subr.mxu0 0.0
  %835 = vmatpush1.msra.mxu0 0.0
  %836 = vmatprep.subr.mxu0 0.0
  %837 = vmatpush1.msra.mxu0 0.0
  %838 = vmatprep.subr.mxu0 0.0
  %839 = vmatpush1.msra.mxu0 0.0
  %840 = vmatprep.subr.mxu0 0.0
  %841 = vmatpush1.msra.mxu0 0.0
  %842 = vmatprep.subr.mxu0 0.0
  %843 = vmatpush1.msra.mxu0 0.0
  %844 = vmatprep.subr.mxu0 0.0
  %845 = vmatpush1.msra.mxu0 0.0
  %846 = vmatprep.subr.mxu0 0.0
  %847 = vmatpush1.msra.mxu0 0.0
  %848 = vmatprep.subr.mxu0 0.0
  %849 = vmatpush1.msra.mxu0 0.0
  %850 = vmatprep.subr.mxu0 0.0
  %851 = vmatpush1.msra.mxu0 0.0
  %852 = vmatprep.subr.mxu0 0.0
  %853 = vmatpush1.msra.mxu0 0.0
  %854 = vmatprep.subr.mxu0 0.0
  %855 = vmatpush1.msra.mxu0 0.0
  %856 = vmatprep.subr.mxu0 0.0
  %857 = vmatpush1.msra.mxu0 0.0
  %858 = vmatprep.subr.mxu0 0.0
  %859 = vmatpush1.msra.mxu0 0.0
  %860 = vmatprep.subr.mxu0 0.0
  %861 = vmatpush1.msra.mxu0 0.0
  %862 = vmatprep.subr.mxu0 0.0
  %863 = vmatpush1.msra.mxu0 0.0
  %864 = vmatprep.subr.mxu0 0.0
  %865 = vmatpush1.msra.mxu0 0.0
  %866 = vmatprep.mubr.f32.mxu0 0.0
  %v867 = vand.u32 %v497, 4294901760
  %868 = vmatmul.mubr.f32.gmra.mrb[0].mxu0 %v867
  %v869 = vpop.f32.mrb[0].mxu0
  %v870 = vadd.f32 %v796, %v869
  %v871 = vpop.f32.mrb[0].mxu0
  %872 = vdwg.mxu0
  %873 = vmatprep.subr.mxu0 0.0
  %v874 = vand.u32 %v20, 4294901760
  %875 = vmatpush1.msra.mxu0 %v874
  %876 = vmatprep.subr.mxu0 0.0
  %877 = vmatpush1.msra.mxu0 0.0
  %878 = vmatprep.subr.mxu0 0.0
  %879 = vmatpush1.msra.mxu0 0.0
  %880 = vmatprep.subr.mxu0 0.0
  %881 = vmatpush1.msra.mxu0 0.0
  %882 = vmatprep.subr.mxu0 0.0
  %883 = vmatpush1.msra.mxu0 0.0
  %884 = vmatprep.subr.mxu0 0.0
  %885 = vmatpush1.msra.mxu0 0.0
  %886 = vmatprep.subr.mxu0 0.0
  %887 = vmatpush1.msra.mxu0 0.0
  %888 = vmatprep.subr.mxu0 0.0
  %889 = vmatpush1.msra.mxu0 0.0
  %890 = vmatprep.subr.mxu0 0.0
  %891 = vmatpush1.msra.mxu0 0.0
  %892 = vmatprep.subr.mxu0 0.0
  %893 = vmatpush1.msra.mxu0 0.0
  %894 = vmatprep.subr.mxu0 0.0
  %895 = vmatpush1.msra.mxu0 0.0
  %896 = vmatprep.subr.mxu0 0.0
  %897 = vmatpush1.msra.mxu0 0.0
  %898 = vmatprep.subr.mxu0 0.0
  %899 = vmatpush1.msra.mxu0 0.0
  %900 = vmatprep.subr.mxu0 0.0
  %901 = vmatpush1.msra.mxu0 0.0
  %902 = vmatprep.subr.mxu0 0.0
  %903 = vmatpush1.msra.mxu0 0.0
  %904 = vmatprep.subr.mxu0 0.0
  %905 = vmatpush1.msra.mxu0 0.0
  %906 = vmatprep.subr.mxu0 0.0
  %907 = vmatpush1.msra.mxu0 0.0
  %908 = vmatprep.subr.mxu0 0.0
  %909 = vmatpush1.msra.mxu0 0.0
  %910 = vmatprep.subr.mxu0 0.0
  %911 = vmatpush1.msra.mxu0 0.0
  %912 = vmatprep.subr.mxu0 0.0
  %913 = vmatpush1.msra.mxu0 0.0
  %914 = vmatprep.subr.mxu0 0.0
  %915 = vmatpush1.msra.mxu0 0.0
  %916 = vmatprep.subr.mxu0 0.0
  %917 = vmatpush1.msra.mxu0 0.0
  %918 = vmatprep.subr.mxu0 0.0
  %919 = vmatpush1.msra.mxu0 0.0
  %920 = vmatprep.subr.mxu0 0.0
  %921 = vmatpush1.msra.mxu0 0.0
  %922 = vmatprep.subr.mxu0 0.0
  %923 = vmatpush1.msra.mxu0 0.0
  %924 = vmatprep.subr.mxu0 0.0
  %925 = vmatpush1.msra.mxu0 0.0
  %926 = vmatprep.subr.mxu0 0.0
  %927 = vmatpush1.msra.mxu0 0.0
  %928 = vmatprep.subr.mxu0 0.0
  %929 = vmatpush1.msra.mxu0 0.0
  %930 = vmatprep.subr.mxu0 0.0
  %931 = vmatpush1.msra.mxu0 0.0
  %932 = vmatprep.subr.mxu0 0.0
  %933 = vmatpush1.msra.mxu0 0.0
  %934 = vmatprep.subr.mxu0 0.0
  %935 = vmatpush1.msra.mxu0 0.0
  %936 = vmatprep.subr.mxu0 0.0
  %937 = vmatpush1.msra.mxu0 0.0
  %938 = vmatprep.mubr.f32.mxu0 0.0
  %v939 = vand.u32 %v497, 4294901760
  %940 = vmatmul.mubr.f32.gmra.mrb[0].mxu0 %v939
  %v941 = vpop.f32.mrb[0].mxu0
  %v942 = vadd.f32 %v870, %v941
  %v943 = vpop.f32.mrb[0].mxu0
  %944 = vdwg.mxu0
  %946 = vrot.lane.b32.xlu0 %v942, 32
  %v947 = vpop.permute.xlu0 %946
  %v949 = vmul.f32 %v17, %v947
  %v950 = vmul.f32 %v18, %v942
  %v951 = vadd.f32 %v949, %v950
  %953 = vrot.lane.b32.xlu0 %v951, 96
  %v954 = vpop.permute.xlu0 %953
  %v956 = vsel %vm486, %v954, 0.0
  %957 = vadd.xlane.f32.xlu0 %v956
  %v958 = vpop.xlane.xlu0 %957
  %959 = vset.pattern.permute.xlu0 2
  %960 = vperm.xlu0 %959, %v19
  %v961 = vpop.permute.xlu0 %960
  %vm962 = vcmp.eq.s32.totalorder %v22, %v961
  %v963 = vsel %vm962, 1, 0
  %v964 = vcvt.s32.f32 %v963
  %v966 = vsel %vm29, %v964, 0
  %968 = vmatprep.subr.mxu0 0.0
  %v969 = vand.u32 %v20, 4294901760
  %970 = vmatpush1.msra.mxu0 %v969
  %971 = vmatprep.subr.mxu0 0.0
  %972 = vmatpush1.msra.mxu0 0.0
  %973 = vmatprep.subr.mxu0 0.0
  %974 = vmatpush1.msra.mxu0 0.0
  %975 = vmatprep.subr.mxu0 0.0
  %976 = vmatpush1.msra.mxu0 0.0
  %977 = vmatprep.subr.mxu0 0.0
  %978 = vmatpush1.msra.mxu0 0.0
  %979 = vmatprep.subr.mxu0 0.0
  %980 = vmatpush1.msra.mxu0 0.0
  %981 = vmatprep.subr.mxu0 0.0
  %982 = vmatpush1.msra.mxu0 0.0
  %983 = vmatprep.subr.mxu0 0.0
  %984 = vmatpush1.msra.mxu0 0.0
  %985 = vmatprep.subr.mxu0 0.0
  %986 = vmatpush1.msra.mxu0 0.0
  %987 = vmatprep.subr.mxu0 0.0
  %988 = vmatpush1.msra.mxu0 0.0
  %989 = vmatprep.subr.mxu0 0.0
  %990 = vmatpush1.msra.mxu0 0.0
  %991 = vmatprep.subr.mxu0 0.0
  %992 = vmatpush1.msra.mxu0 0.0
  %993 = vmatprep.subr.mxu0 0.0
  %994 = vmatpush1.msra.mxu0 0.0
  %995 = vmatprep.subr.mxu0 0.0
  %996 = vmatpush1.msra.mxu0 0.0
  %997 = vmatprep.subr.mxu0 0.0
  %998 = vmatpush1.msra.mxu0 0.0
  %999 = vmatprep.subr.mxu0 0.0
  %1000 = vmatpush1.msra.mxu0 0.0
  %1001 = vmatprep.subr.mxu0 0.0
  %1002 = vmatpush1.msra.mxu0 0.0
  %1003 = vmatprep.subr.mxu0 0.0
  %1004 = vmatpush1.msra.mxu0 0.0
  %1005 = vmatprep.subr.mxu0 0.0
  %1006 = vmatpush1.msra.mxu0 0.0
  %1007 = vmatprep.subr.mxu0 0.0
  %1008 = vmatpush1.msra.mxu0 0.0
  %1009 = vmatprep.subr.mxu0 0.0
  %1010 = vmatpush1.msra.mxu0 0.0
  %1011 = vmatprep.subr.mxu0 0.0
  %1012 = vmatpush1.msra.mxu0 0.0
  %1013 = vmatprep.subr.mxu0 0.0
  %1014 = vmatpush1.msra.mxu0 0.0
  %1015 = vmatprep.subr.mxu0 0.0
  %1016 = vmatpush1.msra.mxu0 0.0
  %1017 = vmatprep.subr.mxu0 0.0
  %1018 = vmatpush1.msra.mxu0 0.0
  %1019 = vmatprep.subr.mxu0 0.0
  %1020 = vmatpush1.msra.mxu0 0.0
  %1021 = vmatprep.subr.mxu0 0.0
  %1022 = vmatpush1.msra.mxu0 0.0
  %1023 = vmatprep.subr.mxu0 0.0
  %1024 = vmatpush1.msra.mxu0 0.0
  %1025 = vmatprep.subr.mxu0 0.0
  %1026 = vmatpush1.msra.mxu0 0.0
  %1027 = vmatprep.subr.mxu0 0.0
  %1028 = vmatpush1.msra.mxu0 0.0
  %1029 = vmatprep.subr.mxu0 0.0
  %1030 = vmatpush1.msra.mxu0 0.0
  %1031 = vmatprep.subr.mxu0 0.0
  %1032 = vmatpush1.msra.mxu0 0.0
  %1033 = vmatprep.mubr.f32.mxu0 0.0
  %v1034 = vand.u32 %v966, 4294901760
  %v1035 = vsub.f32 %v966, %v1034
  %v1036 = vand.u32 %v1035, 4294901760
  %v1037 = vsub.f32 %v1035, %v1036
  %v1038 = vand.u32 %v1037, 4294901760
  %1039 = vmatmul.mubr.f32.gmra.mrb[0].mxu0 %v1038
  %v1040 = vpop.f32.mrb[0].mxu0
  %v1041 = vadd.f32 0.0, %v1040
  %v1042 = vpop.f32.mrb[0].mxu0
  %1043 = vdwg.mxu0
  %1044 = vmatprep.subr.mxu0 0.0
  %v1045 = vand.u32 %v20, 4294901760
  %v1046 = vsub.f32 %v20, %v1045
  %v1047 = vand.u32 %v1046, 4294901760
  %v1048 = vsub.f32 %v1046, %v1047
  %v1049 = vand.u32 %v1048, 4294901760
  %1050 = vmatpush1.msra.mxu0 %v1049
  %1051 = vmatprep.subr.mxu0 0.0
  %1052 = vmatpush1.msra.mxu0 0.0
  %1053 = vmatprep.subr.mxu0 0.0
  %1054 = vmatpush1.msra.mxu0 0.0
  %1055 = vmatprep.subr.mxu0 0.0
  %1056 = vmatpush1.msra.mxu0 0.0
  %1057 = vmatprep.subr.mxu0 0.0
  %1058 = vmatpush1.msra.mxu0 0.0
  %1059 = vmatprep.subr.mxu0 0.0
  %1060 = vmatpush1.msra.mxu0 0.0
  %1061 = vmatprep.subr.mxu0 0.0
  %1062 = vmatpush1.msra.mxu0 0.0
  %1063 = vmatprep.subr.mxu0 0.0
  %1064 = vmatpush1.msra.mxu0 0.0
  %1065 = vmatprep.subr.mxu0 0.0
  %1066 = vmatpush1.msra.mxu0 0.0
  %1067 = vmatprep.subr.mxu0 0.0
  %1068 = vmatpush1.msra.mxu0 0.0
  %1069 = vmatprep.subr.mxu0 0.0
  %1070 = vmatpush1.msra.mxu0 0.0
  %1071 = vmatprep.subr.mxu0 0.0
  %1072 = vmatpush1.msra.mxu0 0.0
  %1073 = vmatprep.subr.mxu0 0.0
  %1074 = vmatpush1.msra.mxu0 0.0
  %1075 = vmatprep.subr.mxu0 0.0
  %1076 = vmatpush1.msra.mxu0 0.0
  %1077 = vmatprep.subr.mxu0 0.0
  %1078 = vmatpush1.msra.mxu0 0.0
  %1079 = vmatprep.subr.mxu0 0.0
  %1080 = vmatpush1.msra.mxu0 0.0
  %1081 = vmatprep.subr.mxu0 0.0
  %1082 = vmatpush1.msra.mxu0 0.0
  %1083 = vmatprep.subr.mxu0 0.0
  %1084 = vmatpush1.msra.mxu0 0.0
  %1085 = vmatprep.subr.mxu0 0.0
  %1086 = vmatpush1.msra.mxu0 0.0
  %1087 = vmatprep.subr.mxu0 0.0
  %1088 = vmatpush1.msra.mxu0 0.0
  %1089 = vmatprep.subr.mxu0 0.0
  %1090 = vmatpush1.msra.mxu0 0.0
  %1091 = vmatprep.subr.mxu0 0.0
  %1092 = vmatpush1.msra.mxu0 0.0
  %1093 = vmatprep.subr.mxu0 0.0
  %1094 = vmatpush1.msra.mxu0 0.0
  %1095 = vmatprep.subr.mxu0 0.0
  %1096 = vmatpush1.msra.mxu0 0.0
  %1097 = vmatprep.subr.mxu0 0.0
  %1098 = vmatpush1.msra.mxu0 0.0
  %1099 = vmatprep.subr.mxu0 0.0
  %1100 = vmatpush1.msra.mxu0 0.0
  %1101 = vmatprep.subr.mxu0 0.0
  %1102 = vmatpush1.msra.mxu0 0.0
  %1103 = vmatprep.subr.mxu0 0.0
  %1104 = vmatpush1.msra.mxu0 0.0
  %1105 = vmatprep.subr.mxu0 0.0
  %1106 = vmatpush1.msra.mxu0 0.0
  %1107 = vmatprep.subr.mxu0 0.0
  %1108 = vmatpush1.msra.mxu0 0.0
  %1109 = vmatprep.subr.mxu0 0.0
  %1110 = vmatpush1.msra.mxu0 0.0
  %1111 = vmatprep.subr.mxu0 0.0
  %1112 = vmatpush1.msra.mxu0 0.0
  %1113 = vmatprep.mubr.f32.mxu0 0.0
  %v1114 = vand.u32 %v966, 4294901760
  %1115 = vmatmul.mubr.f32.gmra.mrb[0].mxu0 %v1114
  %v1116 = vpop.f32.mrb[0].mxu0
  %v1117 = vadd.f32 %v1041, %v1116
  %v1118 = vpop.f32.mrb[0].mxu0
  %1119 = vdwg.mxu0
  %1120 = vmatprep.subr.mxu0 0.0
  %v1121 = vand.u32 %v20, 4294901760
  %v1122 = vsub.f32 %v20, %v1121
  %1123 = vmatpush1.msra.mxu0 %v1122
  %1124 = vmatprep.subr.mxu0 0.0
  %1125 = vmatpush1.msra.mxu0 0.0
  %1126 = vmatprep.subr.mxu0 0.0
  %1127 = vmatpush1.msra.mxu0 0.0
  %1128 = vmatprep.subr.mxu0 0.0
  %1129 = vmatpush1.msra.mxu0 0.0
  %1130 = vmatprep.subr.mxu0 0.0
  %1131 = vmatpush1.msra.mxu0 0.0
  %1132 = vmatprep.subr.mxu0 0.0
  %1133 = vmatpush1.msra.mxu0 0.0
  %1134 = vmatprep.subr.mxu0 0.0
  %1135 = vmatpush1.msra.mxu0 0.0
  %1136 = vmatprep.subr.mxu0 0.0
  %1137 = vmatpush1.msra.mxu0 0.0
  %1138 = vmatprep.subr.mxu0 0.0
  %1139 = vmatpush1.msra.mxu0 0.0
  %1140 = vmatprep.subr.mxu0 0.0
  %1141 = vmatpush1.msra.mxu0 0.0
  %1142 = vmatprep.subr.mxu0 0.0
  %1143 = vmatpush1.msra.mxu0 0.0
  %1144 = vmatprep.subr.mxu0 0.0
  %1145 = vmatpush1.msra.mxu0 0.0
  %1146 = vmatprep.subr.mxu0 0.0
  %1147 = vmatpush1.msra.mxu0 0.0
  %1148 = vmatprep.subr.mxu0 0.0
  %1149 = vmatpush1.msra.mxu0 0.0
  %1150 = vmatprep.subr.mxu0 0.0
  %1151 = vmatpush1.msra.mxu0 0.0
  %1152 = vmatprep.subr.mxu0 0.0
  %1153 = vmatpush1.msra.mxu0 0.0
  %1154 = vmatprep.subr.mxu0 0.0
  %1155 = vmatpush1.msra.mxu0 0.0
  %1156 = vmatprep.subr.mxu0 0.0
  %1157 = vmatpush1.msra.mxu0 0.0
  %1158 = vmatprep.subr.mxu0 0.0
  %1159 = vmatpush1.msra.mxu0 0.0
  %1160 = vmatprep.subr.mxu0 0.0
  %1161 = vmatpush1.msra.mxu0 0.0
  %1162 = vmatprep.subr.mxu0 0.0
  %1163 = vmatpush1.msra.mxu0 0.0
  %1164 = vmatprep.subr.mxu0 0.0
  %1165 = vmatpush1.msra.mxu0 0.0
  %1166 = vmatprep.subr.mxu0 0.0
  %1167 = vmatpush1.msra.mxu0 0.0
  %1168 = vmatprep.subr.mxu0 0.0
  %1169 = vmatpush1.msra.mxu0 0.0
  %1170 = vmatprep.subr.mxu0 0.0
  %1171 = vmatpush1.msra.mxu0 0.0
  %1172 = vmatprep.subr.mxu0 0.0
  %1173 = vmatpush1.msra.mxu0 0.0
  %1174 = vmatprep.subr.mxu0 0.0
  %1175 = vmatpush1.msra.mxu0 0.0
  %1176 = vmatprep.subr.mxu0 0.0
  %1177 = vmatpush1.msra.mxu0 0.0
  %1178 = vmatprep.subr.mxu0 0.0
  %1179 = vmatpush1.msra.mxu0 0.0
  %1180 = vmatprep.subr.mxu0 0.0
  %1181 = vmatpush1.msra.mxu0 0.0
  %1182 = vmatprep.subr.mxu0 0.0
  %1183 = vmatpush1.msra.mxu0 0.0
  %1184 = vmatprep.subr.mxu0 0.0
  %1185 = vmatpush1.msra.mxu0 0.0
  %1186 = vmatprep.mubr.f32.mxu0 0.0
  %v1187 = vand.u32 %v966, 4294901760
  %v1188 = vsub.f32 %v966, %v1187
  %1189 = vmatmul.mubr.f32.gmra.mrb[0].mxu0 %v1188
  %v1190 = vpop.f32.mrb[0].mxu0
  %v1191 = vadd.f32 %v1117, %v1190
  %v1192 = vpop.f32.mrb[0].mxu0
  %1193 = vdwg.mxu0
  %1194 = vmatprep.subr.mxu0 0.0
  %v1195 = vand.u32 %v20, 4294901760
  %1196 = vmatpush1.msra.mxu0 %v1195
  %1197 = vmatprep.subr.mxu0 0.0
  %1198 = vmatpush1.msra.mxu0 0.0
  %1199 = vmatprep.subr.mxu0 0.0
  %1200 = vmatpush1.msra.mxu0 0.0
  %1201 = vmatprep.subr.mxu0 0.0
  %1202 = vmatpush1.msra.mxu0 0.0
  %1203 = vmatprep.subr.mxu0 0.0
  %1204 = vmatpush1.msra.mxu0 0.0
  %1205 = vmatprep.subr.mxu0 0.0
  %1206 = vmatpush1.msra.mxu0 0.0
  %1207 = vmatprep.subr.mxu0 0.0
  %1208 = vmatpush1.msra.mxu0 0.0
  %1209 = vmatprep.subr.mxu0 0.0
  %1210 = vmatpush1.msra.mxu0 0.0
  %1211 = vmatprep.subr.mxu0 0.0
  %1212 = vmatpush1.msra.mxu0 0.0
  %1213 = vmatprep.subr.mxu0 0.0
  %1214 = vmatpush1.msra.mxu0 0.0
  %1215 = vmatprep.subr.mxu0 0.0
  %1216 = vmatpush1.msra.mxu0 0.0
  %1217 = vmatprep.subr.mxu0 0.0
  %1218 = vmatpush1.msra.mxu0 0.0
  %1219 = vmatprep.subr.mxu0 0.0
  %1220 = vmatpush1.msra.mxu0 0.0
  %1221 = vmatprep.subr.mxu0 0.0
  %1222 = vmatpush1.msra.mxu0 0.0
  %1223 = vmatprep.subr.mxu0 0.0
  %1224 = vmatpush1.msra.mxu0 0.0
  %1225 = vmatprep.subr.mxu0 0.0
  %1226 = vmatpush1.msra.mxu0 0.0
  %1227 = vmatprep.subr.mxu0 0.0
  %1228 = vmatpush1.msra.mxu0 0.0
  %1229 = vmatprep.subr.mxu0 0.0
  %1230 = vmatpush1.msra.mxu0 0.0
  %1231 = vmatprep.subr.mxu0 0.0
  %1232 = vmatpush1.msra.mxu0 0.0
  %1233 = vmatprep.subr.mxu0 0.0
  %1234 = vmatpush1.msra.mxu0 0.0
  %1235 = vmatprep.subr.mxu0 0.0
  %1236 = vmatpush1.msra.mxu0 0.0
  %1237 = vmatprep.subr.mxu0 0.0
  %1238 = vmatpush1.msra.mxu0 0.0
  %1239 = vmatprep.subr.mxu0 0.0
  %1240 = vmatpush1.msra.mxu0 0.0
  %1241 = vmatprep.subr.mxu0 0.0
  %1242 = vmatpush1.msra.mxu0 0.0
  %1243 = vmatprep.subr.mxu0 0.0
  %1244 = vmatpush1.msra.mxu0 0.0
  %1245 = vmatprep.subr.mxu0 0.0
  %1246 = vmatpush1.msra.mxu0 0.0
  %1247 = vmatprep.subr.mxu0 0.0
  %1248 = vmatpush1.msra.mxu0 0.0
  %1249 = vmatprep.subr.mxu0 0.0
  %1250 = vmatpush1.msra.mxu0 0.0
  %1251 = vmatprep.subr.mxu0 0.0
  %1252 = vmatpush1.msra.mxu0 0.0
  %1253 = vmatprep.subr.mxu0 0.0
  %1254 = vmatpush1.msra.mxu0 0.0
  %1255 = vmatprep.subr.mxu0 0.0
  %1256 = vmatpush1.msra.mxu0 0.0
  %1257 = vmatprep.subr.mxu0 0.0
  %1258 = vmatpush1.msra.mxu0 0.0
  %1259 = vmatprep.mubr.f32.mxu0 0.0
  %v1260 = vand.u32 %v966, 4294901760
  %v1261 = vsub.f32 %v966, %v1260
  %v1262 = vand.u32 %v1261, 4294901760
  %1263 = vmatmul.mubr.f32.gmra.mrb[0].mxu0 %v1262
  %v1264 = vpop.f32.mrb[0].mxu0
  %v1265 = vadd.f32 %v1191, %v1264
  %v1266 = vpop.f32.mrb[0].mxu0
  %1267 = vdwg.mxu0
  %1268 = vmatprep.subr.mxu0 0.0
  %v1269 = vand.u32 %v20, 4294901760
  %v1270 = vsub.f32 %v20, %v1269
  %v1271 = vand.u32 %v1270, 4294901760
  %1272 = vmatpush1.msra.mxu0 %v1271
  %1273 = vmatprep.subr.mxu0 0.0
  %1274 = vmatpush1.msra.mxu0 0.0
  %1275 = vmatprep.subr.mxu0 0.0
  %1276 = vmatpush1.msra.mxu0 0.0
  %1277 = vmatprep.subr.mxu0 0.0
  %1278 = vmatpush1.msra.mxu0 0.0
  %1279 = vmatprep.subr.mxu0 0.0
  %1280 = vmatpush1.msra.mxu0 0.0
  %1281 = vmatprep.subr.mxu0 0.0
  %1282 = vmatpush1.msra.mxu0 0.0
  %1283 = vmatprep.subr.mxu0 0.0
  %1284 = vmatpush1.msra.mxu0 0.0
  %1285 = vmatprep.subr.mxu0 0.0
  %1286 = vmatpush1.msra.mxu0 0.0
  %1287 = vmatprep.subr.mxu0 0.0
  %1288 = vmatpush1.msra.mxu0 0.0
  %1289 = vmatprep.subr.mxu0 0.0
  %1290 = vmatpush1.msra.mxu0 0.0
  %1291 = vmatprep.subr.mxu0 0.0
  %1292 = vmatpush1.msra.mxu0 0.0
  %1293 = vmatprep.subr.mxu0 0.0
  %1294 = vmatpush1.msra.mxu0 0.0
  %1295 = vmatprep.subr.mxu0 0.0
  %1296 = vmatpush1.msra.mxu0 0.0
  %1297 = vmatprep.subr.mxu0 0.0
  %1298 = vmatpush1.msra.mxu0 0.0
  %1299 = vmatprep.subr.mxu0 0.0
  %1300 = vmatpush1.msra.mxu0 0.0
  %1301 = vmatprep.subr.mxu0 0.0
  %1302 = vmatpush1.msra.mxu0 0.0
  %1303 = vmatprep.subr.mxu0 0.0
  %1304 = vmatpush1.msra.mxu0 0.0
  %1305 = vmatprep.subr.mxu0 0.0
  %1306 = vmatpush1.msra.mxu0 0.0
  %1307 = vmatprep.subr.mxu0 0.0
  %1308 = vmatpush1.msra.mxu0 0.0
  %1309 = vmatprep.subr.mxu0 0.0
  %1310 = vmatpush1.msra.mxu0 0.0
  %1311 = vmatprep.subr.mxu0 0.0
  %1312 = vmatpush1.msra.mxu0 0.0
  %1313 = vmatprep.subr.mxu0 0.0
  %1314 = vmatpush1.msra.mxu0 0.0
  %1315 = vmatprep.subr.mxu0 0.0
  %1316 = vmatpush1.msra.mxu0 0.0
  %1317 = vmatprep.subr.mxu0 0.0
  %1318 = vmatpush1.msra.mxu0 0.0
  %1319 = vmatprep.subr.mxu0 0.0
  %1320 = vmatpush1.msra.mxu0 0.0
  %1321 = vmatprep.subr.mxu0 0.0
  %1322 = vmatpush1.msra.mxu0 0.0
  %1323 = vmatprep.subr.mxu0 0.0
  %1324 = vmatpush1.msra.mxu0 0.0
  %1325 = vmatprep.subr.mxu0 0.0
  %1326 = vmatpush1.msra.mxu0 0.0
  %1327 = vmatprep.subr.mxu0 0.0
  %1328 = vmatpush1.msra.mxu0 0.0
  %1329 = vmatprep.subr.mxu0 0.0
  %1330 = vmatpush1.msra.mxu0 0.0
  %1331 = vmatprep.subr.mxu0 0.0
  %1332 = vmatpush1.msra.mxu0 0.0
  %1333 = vmatprep.subr.mxu0 0.0
  %1334 = vmatpush1.msra.mxu0 0.0
  %1335 = vmatprep.mubr.f32.mxu0 0.0
  %v1336 = vand.u32 %v966, 4294901760
  %1337 = vmatmul.mubr.f32.gmra.mrb[0].mxu0 %v1336
  %v1338 = vpop.f32.mrb[0].mxu0
  %v1339 = vadd.f32 %v1265, %v1338
  %v1340 = vpop.f32.mrb[0].mxu0
  %1341 = vdwg.mxu0
  %1342 = vmatprep.subr.mxu0 0.0
  %v1343 = vand.u32 %v20, 4294901760
  %1344 = vmatpush1.msra.mxu0 %v1343
  %1345 = vmatprep.subr.mxu0 0.0
  %1346 = vmatpush1.msra.mxu0 0.0
  %1347 = vmatprep.subr.mxu0 0.0
  %1348 = vmatpush1.msra.mxu0 0.0
  %1349 = vmatprep.subr.mxu0 0.0
  %1350 = vmatpush1.msra.mxu0 0.0
  %1351 = vmatprep.subr.mxu0 0.0
  %1352 = vmatpush1.msra.mxu0 0.0
  %1353 = vmatprep.subr.mxu0 0.0
  %1354 = vmatpush1.msra.mxu0 0.0
  %1355 = vmatprep.subr.mxu0 0.0
  %1356 = vmatpush1.msra.mxu0 0.0
  %1357 = vmatprep.subr.mxu0 0.0
  %1358 = vmatpush1.msra.mxu0 0.0
  %1359 = vmatprep.subr.mxu0 0.0
  %1360 = vmatpush1.msra.mxu0 0.0
  %1361 = vmatprep.subr.mxu0 0.0
  %1362 = vmatpush1.msra.mxu0 0.0
  %1363 = vmatprep.subr.mxu0 0.0
  %1364 = vmatpush1.msra.mxu0 0.0
  %1365 = vmatprep.subr.mxu0 0.0
  %1366 = vmatpush1.msra.mxu0 0.0
  %1367 = vmatprep.subr.mxu0 0.0
  %1368 = vmatpush1.msra.mxu0 0.0
  %1369 = vmatprep.subr.mxu0 0.0
  %1370 = vmatpush1.msra.mxu0 0.0
  %1371 = vmatprep.subr.mxu0 0.0
  %1372 = vmatpush1.msra.mxu0 0.0
  %1373 = vmatprep.subr.mxu0 0.0
  %1374 = vmatpush1.msra.mxu0 0.0
  %1375 = vmatprep.subr.mxu0 0.0
  %1376 = vmatpush1.msra.mxu0 0.0
  %1377 = vmatprep.subr.mxu0 0.0
  %1378 = vmatpush1.msra.mxu0 0.0
  %1379 = vmatprep.subr.mxu0 0.0
  %1380 = vmatpush1.msra.mxu0 0.0
  %1381 = vmatprep.subr.mxu0 0.0
  %1382 = vmatpush1.msra.mxu0 0.0
  %1383 = vmatprep.subr.mxu0 0.0
  %1384 = vmatpush1.msra.mxu0 0.0
  %1385 = vmatprep.subr.mxu0 0.0
  %1386 = vmatpush1.msra.mxu0 0.0
  %1387 = vmatprep.subr.mxu0 0.0
  %1388 = vmatpush1.msra.mxu0 0.0
  %1389 = vmatprep.subr.mxu0 0.0
  %1390 = vmatpush1.msra.mxu0 0.0
  %1391 = vmatprep.subr.mxu0 0.0
  %1392 = vmatpush1.msra.mxu0 0.0
  %1393 = vmatprep.subr.mxu0 0.0
  %1394 = vmatpush1.msra.mxu0 0.0
  %1395 = vmatprep.subr.mxu0 0.0
  %1396 = vmatpush1.msra.mxu0 0.0
  %1397 = vmatprep.subr.mxu0 0.0
  %1398 = vmatpush1.msra.mxu0 0.0
  %1399 = vmatprep.subr.mxu0 0.0
  %1400 = vmatpush1.msra.mxu0 0.0
  %1401 = vmatprep.subr.mxu0 0.0
  %1402 = vmatpush1.msra.mxu0 0.0
  %1403 = vmatprep.subr.mxu0 0.0
  %1404 = vmatpush1.msra.mxu0 0.0
  %1405 = vmatprep.subr.mxu0 0.0
  %1406 = vmatpush1.msra.mxu0 0.0
  %1407 = vmatprep.mubr.f32.mxu0 0.0
  %v1408 = vand.u32 %v966, 4294901760
  %1409 = vmatmul.mubr.f32.gmra.mrb[0].mxu0 %v1408
  %v1410 = vpop.f32.mrb[0].mxu0
  %v1411 = vadd.f32 %v1339, %v1410
  %v1412 = vpop.f32.mrb[0].mxu0
  %1413 = vdwg.mxu0
  %1415 = vrot.lane.b32.xlu0 %v1411, 64
  %v1416 = vpop.permute.xlu0 %1415
  %v1418 = vmul.f32 %v17, %v1416
  %1419 = vrot.lane.b32.xlu0 %v1411, 32
  %v1420 = vpop.permute.xlu0 %1419
  %v1422 = vmul.f32 %v18, %v1420
  %v1423 = vadd.f32 %v1418, %v1422
  %1425 = vrot.lane.b32.xlu0 %v1423, 64
  %v1426 = vpop.permute.xlu0 %1425
  %v1428 = vsel %vm486, %v1426, 0.0
  %1429 = vadd.xlane.f32.xlu0 %v1428
  %v1430 = vpop.xlane.xlu0 %1429
  %1431 = vset.pattern.permute.xlu0 3
  %1432 = vperm.xlu0 %1431, %v19
  %v1433 = vpop.permute.xlu0 %1432
  %vm1434 = vcmp.eq.s32.totalorder %v22, %v1433
  %v1435 = vsel %vm1434, 1, 0
  %v1436 = vcvt.s32.f32 %v1435
  %v1438 = vsel %vm29, %v1436, 0
  %1440 = vmatprep.subr.mxu0 0.0
  %v1441 = vand.u32 %v20, 4294901760
  %1442 = vmatpush1.msra.mxu0 %v1441
  %1443 = vmatprep.subr.mxu0 0.0
  %1444 = vmatpush1.msra.mxu0 0.0
  %1445 = vmatprep.subr.mxu0 0.0
  %1446 = vmatpush1.msra.mxu0 0.0
  %1447 = vmatprep.subr.mxu0 0.0
  %1448 = vmatpush1.msra.mxu0 0.0
  %1449 = vmatprep.subr.mxu0 0.0
  %1450 = vmatpush1.msra.mxu0 0.0
  %1451 = vmatprep.subr.mxu0 0.0
  %1452 = vmatpush1.msra.mxu0 0.0
  %1453 = vmatprep.subr.mxu0 0.0
  %1454 = vmatpush1.msra.mxu0 0.0
  %1455 = vmatprep.subr.mxu0 0.0
  %1456 = vmatpush1.msra.mxu0 0.0
  %1457 = vmatprep.subr.mxu0 0.0
  %1458 = vmatpush1.msra.mxu0 0.0
  %1459 = vmatprep.subr.mxu0 0.0
  %1460 = vmatpush1.msra.mxu0 0.0
  %1461 = vmatprep.subr.mxu0 0.0
  %1462 = vmatpush1.msra.mxu0 0.0
  %1463 = vmatprep.subr.mxu0 0.0
  %1464 = vmatpush1.msra.mxu0 0.0
  %1465 = vmatprep.subr.mxu0 0.0
  %1466 = vmatpush1.msra.mxu0 0.0
  %1467 = vmatprep.subr.mxu0 0.0
  %1468 = vmatpush1.msra.mxu0 0.0
  %1469 = vmatprep.subr.mxu0 0.0
  %1470 = vmatpush1.msra.mxu0 0.0
  %1471 = vmatprep.subr.mxu0 0.0
  %1472 = vmatpush1.msra.mxu0 0.0
  %1473 = vmatprep.subr.mxu0 0.0
  %1474 = vmatpush1.msra.mxu0 0.0
  %1475 = vmatprep.subr.mxu0 0.0
  %1476 = vmatpush1.msra.mxu0 0.0
  %1477 = vmatprep.subr.mxu0 0.0
  %1478 = vmatpush1.msra.mxu0 0.0
  %1479 = vmatprep.subr.mxu0 0.0
  %1480 = vmatpush1.msra.mxu0 0.0
  %1481 = vmatprep.subr.mxu0 0.0
  %1482 = vmatpush1.msra.mxu0 0.0
  %1483 = vmatprep.subr.mxu0 0.0
  %1484 = vmatpush1.msra.mxu0 0.0
  %1485 = vmatprep.subr.mxu0 0.0
  %1486 = vmatpush1.msra.mxu0 0.0
  %1487 = vmatprep.subr.mxu0 0.0
  %1488 = vmatpush1.msra.mxu0 0.0
  %1489 = vmatprep.subr.mxu0 0.0
  %1490 = vmatpush1.msra.mxu0 0.0
  %1491 = vmatprep.subr.mxu0 0.0
  %1492 = vmatpush1.msra.mxu0 0.0
  %1493 = vmatprep.subr.mxu0 0.0
  %1494 = vmatpush1.msra.mxu0 0.0
  %1495 = vmatprep.subr.mxu0 0.0
  %1496 = vmatpush1.msra.mxu0 0.0
  %1497 = vmatprep.subr.mxu0 0.0
  %1498 = vmatpush1.msra.mxu0 0.0
  %1499 = vmatprep.subr.mxu0 0.0
  %1500 = vmatpush1.msra.mxu0 0.0
  %1501 = vmatprep.subr.mxu0 0.0
  %1502 = vmatpush1.msra.mxu0 0.0
  %1503 = vmatprep.subr.mxu0 0.0
  %1504 = vmatpush1.msra.mxu0 0.0
  %1505 = vmatprep.mubr.f32.mxu0 0.0
  %v1506 = vand.u32 %v1438, 4294901760
  %v1507 = vsub.f32 %v1438, %v1506
  %v1508 = vand.u32 %v1507, 4294901760
  %v1509 = vsub.f32 %v1507, %v1508
  %v1510 = vand.u32 %v1509, 4294901760
  %1511 = vmatmul.mubr.f32.gmra.mrb[0].mxu0 %v1510
  %v1512 = vpop.f32.mrb[0].mxu0
  %v1513 = vadd.f32 0.0, %v1512
  %v1514 = vpop.f32.mrb[0].mxu0
  %1515 = vdwg.mxu0
  %1516 = vmatprep.subr.mxu0 0.0
  %v1517 = vand.u32 %v20, 4294901760
  %v1518 = vsub.f32 %v20, %v1517
  %v1519 = vand.u32 %v1518, 4294901760
  %v1520 = vsub.f32 %v1518, %v1519
  %v1521 = vand.u32 %v1520, 4294901760
  %1522 = vmatpush1.msra.mxu0 %v1521
  %1523 = vmatprep.subr.mxu0 0.0
  %1524 = vmatpush1.msra.mxu0 0.0
  %1525 = vmatprep.subr.mxu0 0.0
  %1526 = vmatpush1.msra.mxu0 0.0
  %1527 = vmatprep.subr.mxu0 0.0
  %1528 = vmatpush1.msra.mxu0 0.0
  %1529 = vmatprep.subr.mxu0 0.0
  %1530 = vmatpush1.msra.mxu0 0.0
  %1531 = vmatprep.subr.mxu0 0.0
  %1532 = vmatpush1.msra.mxu0 0.0
  %1533 = vmatprep.subr.mxu0 0.0
  %1534 = vmatpush1.msra.mxu0 0.0
  %1535 = vmatprep.subr.mxu0 0.0
  %1536 = vmatpush1.msra.mxu0 0.0
  %1537 = vmatprep.subr.mxu0 0.0
  %1538 = vmatpush1.msra.mxu0 0.0
  %1539 = vmatprep.subr.mxu0 0.0
  %1540 = vmatpush1.msra.mxu0 0.0
  %1541 = vmatprep.subr.mxu0 0.0
  %1542 = vmatpush1.msra.mxu0 0.0
  %1543 = vmatprep.subr.mxu0 0.0
  %1544 = vmatpush1.msra.mxu0 0.0
  %1545 = vmatprep.subr.mxu0 0.0
  %1546 = vmatpush1.msra.mxu0 0.0
  %1547 = vmatprep.subr.mxu0 0.0
  %1548 = vmatpush1.msra.mxu0 0.0
  %1549 = vmatprep.subr.mxu0 0.0
  %1550 = vmatpush1.msra.mxu0 0.0
  %1551 = vmatprep.subr.mxu0 0.0
  %1552 = vmatpush1.msra.mxu0 0.0
  %1553 = vmatprep.subr.mxu0 0.0
  %1554 = vmatpush1.msra.mxu0 0.0
  %1555 = vmatprep.subr.mxu0 0.0
  %1556 = vmatpush1.msra.mxu0 0.0
  %1557 = vmatprep.subr.mxu0 0.0
  %1558 = vmatpush1.msra.mxu0 0.0
  %1559 = vmatprep.subr.mxu0 0.0
  %1560 = vmatpush1.msra.mxu0 0.0
  %1561 = vmatprep.subr.mxu0 0.0
  %1562 = vmatpush1.msra.mxu0 0.0
  %1563 = vmatprep.subr.mxu0 0.0
  %1564 = vmatpush1.msra.mxu0 0.0
  %1565 = vmatprep.subr.mxu0 0.0
  %1566 = vmatpush1.msra.mxu0 0.0
  %1567 = vmatprep.subr.mxu0 0.0
  %1568 = vmatpush1.msra.mxu0 0.0
  %1569 = vmatprep.subr.mxu0 0.0
  %1570 = vmatpush1.msra.mxu0 0.0
  %1571 = vmatprep.subr.mxu0 0.0
  %1572 = vmatpush1.msra.mxu0 0.0
  %1573 = vmatprep.subr.mxu0 0.0
  %1574 = vmatpush1.msra.mxu0 0.0
  %1575 = vmatprep.subr.mxu0 0.0
  %1576 = vmatpush1.msra.mxu0 0.0
  %1577 = vmatprep.subr.mxu0 0.0
  %1578 = vmatpush1.msra.mxu0 0.0
  %1579 = vmatprep.subr.mxu0 0.0
  %1580 = vmatpush1.msra.mxu0 0.0
  %1581 = vmatprep.subr.mxu0 0.0
  %1582 = vmatpush1.msra.mxu0 0.0
  %1583 = vmatprep.subr.mxu0 0.0
  %1584 = vmatpush1.msra.mxu0 0.0
  %1585 = vmatprep.mubr.f32.mxu0 0.0
  %v1586 = vand.u32 %v1438, 4294901760
  %1587 = vmatmul.mubr.f32.gmra.mrb[0].mxu0 %v1586
  %v1588 = vpop.f32.mrb[0].mxu0
  %v1589 = vadd.f32 %v1513, %v1588
  %v1590 = vpop.f32.mrb[0].mxu0
  %1591 = vdwg.mxu0
  %1592 = vmatprep.subr.mxu0 0.0
  %v1593 = vand.u32 %v20, 4294901760
  %v1594 = vsub.f32 %v20, %v1593
  %1595 = vmatpush1.msra.mxu0 %v1594
  %1596 = vmatprep.subr.mxu0 0.0
  %1597 = vmatpush1.msra.mxu0 0.0
  %1598 = vmatprep.subr.mxu0 0.0
  %1599 = vmatpush1.msra.mxu0 0.0
  %1600 = vmatprep.subr.mxu0 0.0
  %1601 = vmatpush1.msra.mxu0 0.0
  %1602 = vmatprep.subr.mxu0 0.0
  %1603 = vmatpush1.msra.mxu0 0.0
  %1604 = vmatprep.subr.mxu0 0.0
  %1605 = vmatpush1.msra.mxu0 0.0
  %1606 = vmatprep.subr.mxu0 0.0
  %1607 = vmatpush1.msra.mxu0 0.0
  %1608 = vmatprep.subr.mxu0 0.0
  %1609 = vmatpush1.msra.mxu0 0.0
  %1610 = vmatprep.subr.mxu0 0.0
  %1611 = vmatpush1.msra.mxu0 0.0
  %1612 = vmatprep.subr.mxu0 0.0
  %1613 = vmatpush1.msra.mxu0 0.0
  %1614 = vmatprep.subr.mxu0 0.0
  %1615 = vmatpush1.msra.mxu0 0.0
  %1616 = vmatprep.subr.mxu0 0.0
  %1617 = vmatpush1.msra.mxu0 0.0
  %1618 = vmatprep.subr.mxu0 0.0
  %1619 = vmatpush1.msra.mxu0 0.0
  %1620 = vmatprep.subr.mxu0 0.0
  %1621 = vmatpush1.msra.mxu0 0.0
  %1622 = vmatprep.subr.mxu0 0.0
  %1623 = vmatpush1.msra.mxu0 0.0
  %1624 = vmatprep.subr.mxu0 0.0
  %1625 = vmatpush1.msra.mxu0 0.0
  %1626 = vmatprep.subr.mxu0 0.0
  %1627 = vmatpush1.msra.mxu0 0.0
  %1628 = vmatprep.subr.mxu0 0.0
  %1629 = vmatpush1.msra.mxu0 0.0
  %1630 = vmatprep.subr.mxu0 0.0
  %1631 = vmatpush1.msra.mxu0 0.0
  %1632 = vmatprep.subr.mxu0 0.0
  %1633 = vmatpush1.msra.mxu0 0.0
  %1634 = vmatprep.subr.mxu0 0.0
  %1635 = vmatpush1.msra.mxu0 0.0
  %1636 = vmatprep.subr.mxu0 0.0
  %1637 = vmatpush1.msra.mxu0 0.0
  %1638 = vmatprep.subr.mxu0 0.0
  %1639 = vmatpush1.msra.mxu0 0.0
  %1640 = vmatprep.subr.mxu0 0.0
  %1641 = vmatpush1.msra.mxu0 0.0
  %1642 = vmatprep.subr.mxu0 0.0
  %1643 = vmatpush1.msra.mxu0 0.0
  %1644 = vmatprep.subr.mxu0 0.0
  %1645 = vmatpush1.msra.mxu0 0.0
  %1646 = vmatprep.subr.mxu0 0.0
  %1647 = vmatpush1.msra.mxu0 0.0
  %1648 = vmatprep.subr.mxu0 0.0
  %1649 = vmatpush1.msra.mxu0 0.0
  %1650 = vmatprep.subr.mxu0 0.0
  %1651 = vmatpush1.msra.mxu0 0.0
  %1652 = vmatprep.subr.mxu0 0.0
  %1653 = vmatpush1.msra.mxu0 0.0
  %1654 = vmatprep.subr.mxu0 0.0
  %1655 = vmatpush1.msra.mxu0 0.0
  %1656 = vmatprep.subr.mxu0 0.0
  %1657 = vmatpush1.msra.mxu0 0.0
  %1658 = vmatprep.mubr.f32.mxu0 0.0
  %v1659 = vand.u32 %v1438, 4294901760
  %v1660 = vsub.f32 %v1438, %v1659
  %1661 = vmatmul.mubr.f32.gmra.mrb[0].mxu0 %v1660
  %v1662 = vpop.f32.mrb[0].mxu0
  %v1663 = vadd.f32 %v1589, %v1662
  %v1664 = vpop.f32.mrb[0].mxu0
  %1665 = vdwg.mxu0
  %1666 = vmatprep.subr.mxu0 0.0
  %v1667 = vand.u32 %v20, 4294901760
  %1668 = vmatpush1.msra.mxu0 %v1667
  %1669 = vmatprep.subr.mxu0 0.0
  %1670 = vmatpush1.msra.mxu0 0.0
  %1671 = vmatprep.subr.mxu0 0.0
  %1672 = vmatpush1.msra.mxu0 0.0
  %1673 = vmatprep.subr.mxu0 0.0
  %1674 = vmatpush1.msra.mxu0 0.0
  %1675 = vmatprep.subr.mxu0 0.0
  %1676 = vmatpush1.msra.mxu0 0.0
  %1677 = vmatprep.subr.mxu0 0.0
  %1678 = vmatpush1.msra.mxu0 0.0
  %1679 = vmatprep.subr.mxu0 0.0
  %1680 = vmatpush1.msra.mxu0 0.0
  %1681 = vmatprep.subr.mxu0 0.0
  %1682 = vmatpush1.msra.mxu0 0.0
  %1683 = vmatprep.subr.mxu0 0.0
  %1684 = vmatpush1.msra.mxu0 0.0
  %1685 = vmatprep.subr.mxu0 0.0
  %1686 = vmatpush1.msra.mxu0 0.0
  %1687 = vmatprep.subr.mxu0 0.0
  %1688 = vmatpush1.msra.mxu0 0.0
  %1689 = vmatprep.subr.mxu0 0.0
  %1690 = vmatpush1.msra.mxu0 0.0
  %1691 = vmatprep.subr.mxu0 0.0
  %1692 = vmatpush1.msra.mxu0 0.0
  %1693 = vmatprep.subr.mxu0 0.0
  %1694 = vmatpush1.msra.mxu0 0.0
  %1695 = vmatprep.subr.mxu0 0.0
  %1696 = vmatpush1.msra.mxu0 0.0
  %1697 = vmatprep.subr.mxu0 0.0
  %1698 = vmatpush1.msra.mxu0 0.0
  %1699 = vmatprep.subr.mxu0 0.0
  %1700 = vmatpush1.msra.mxu0 0.0
  %1701 = vmatprep.subr.mxu0 0.0
  %1702 = vmatpush1.msra.mxu0 0.0
  %1703 = vmatprep.subr.mxu0 0.0
  %1704 = vmatpush1.msra.mxu0 0.0
  %1705 = vmatprep.subr.mxu0 0.0
  %1706 = vmatpush1.msra.mxu0 0.0
  %1707 = vmatprep.subr.mxu0 0.0
  %1708 = vmatpush1.msra.mxu0 0.0
  %1709 = vmatprep.subr.mxu0 0.0
  %1710 = vmatpush1.msra.mxu0 0.0
  %1711 = vmatprep.subr.mxu0 0.0
  %1712 = vmatpush1.msra.mxu0 0.0
  %1713 = vmatprep.subr.mxu0 0.0
  %1714 = vmatpush1.msra.mxu0 0.0
  %1715 = vmatprep.subr.mxu0 0.0
  %1716 = vmatpush1.msra.mxu0 0.0
  %1717 = vmatprep.subr.mxu0 0.0
  %1718 = vmatpush1.msra.mxu0 0.0
  %1719 = vmatprep.subr.mxu0 0.0
  %1720 = vmatpush1.msra.mxu0 0.0
  %1721 = vmatprep.subr.mxu0 0.0
  %1722 = vmatpush1.msra.mxu0 0.0
  %1723 = vmatprep.subr.mxu0 0.0
  %1724 = vmatpush1.msra.mxu0 0.0
  %1725 = vmatprep.subr.mxu0 0.0
  %1726 = vmatpush1.msra.mxu0 0.0
  %1727 = vmatprep.subr.mxu0 0.0
  %1728 = vmatpush1.msra.mxu0 0.0
  %1729 = vmatprep.subr.mxu0 0.0
  %1730 = vmatpush1.msra.mxu0 0.0
  %1731 = vmatprep.mubr.f32.mxu0 0.0
  %v1732 = vand.u32 %v1438, 4294901760
  %v1733 = vsub.f32 %v1438, %v1732
  %v1734 = vand.u32 %v1733, 4294901760
  %1735 = vmatmul.mubr.f32.gmra.mrb[0].mxu0 %v1734
  %v1736 = vpop.f32.mrb[0].mxu0
  %v1737 = vadd.f32 %v1663, %v1736
  %v1738 = vpop.f32.mrb[0].mxu0
  %1739 = vdwg.mxu0
  %1740 = vmatprep.subr.mxu0 0.0
  %v1741 = vand.u32 %v20, 4294901760
  %v1742 = vsub.f32 %v20, %v1741
  %v1743 = vand.u32 %v1742, 4294901760
  %1744 = vmatpush1.msra.mxu0 %v1743
  %1745 = vmatprep.subr.mxu0 0.0
  %1746 = vmatpush1.msra.mxu0 0.0
  %1747 = vmatprep.subr.mxu0 0.0
  %1748 = vmatpush1.msra.mxu0 0.0
  %1749 = vmatprep.subr.mxu0 0.0
  %1750 = vmatpush1.msra.mxu0 0.0
  %1751 = vmatprep.subr.mxu0 0.0
  %1752 = vmatpush1.msra.mxu0 0.0
  %1753 = vmatprep.subr.mxu0 0.0
  %1754 = vmatpush1.msra.mxu0 0.0
  %1755 = vmatprep.subr.mxu0 0.0
  %1756 = vmatpush1.msra.mxu0 0.0
  %1757 = vmatprep.subr.mxu0 0.0
  %1758 = vmatpush1.msra.mxu0 0.0
  %1759 = vmatprep.subr.mxu0 0.0
  %1760 = vmatpush1.msra.mxu0 0.0
  %1761 = vmatprep.subr.mxu0 0.0
  %1762 = vmatpush1.msra.mxu0 0.0
  %1763 = vmatprep.subr.mxu0 0.0
  %1764 = vmatpush1.msra.mxu0 0.0
  %1765 = vmatprep.subr.mxu0 0.0
  %1766 = vmatpush1.msra.mxu0 0.0
  %1767 = vmatprep.subr.mxu0 0.0
  %1768 = vmatpush1.msra.mxu0 0.0
  %1769 = vmatprep.subr.mxu0 0.0
  %1770 = vmatpush1.msra.mxu0 0.0
  %1771 = vmatprep.subr.mxu0 0.0
  %1772 = vmatpush1.msra.mxu0 0.0
  %1773 = vmatprep.subr.mxu0 0.0
  %1774 = vmatpush1.msra.mxu0 0.0
  %1775 = vmatprep.subr.mxu0 0.0
  %1776 = vmatpush1.msra.mxu0 0.0
  %1777 = vmatprep.subr.mxu0 0.0
  %1778 = vmatpush1.msra.mxu0 0.0
  %1779 = vmatprep.subr.mxu0 0.0
  %1780 = vmatpush1.msra.mxu0 0.0
  %1781 = vmatprep.subr.mxu0 0.0
  %1782 = vmatpush1.msra.mxu0 0.0
  %1783 = vmatprep.subr.mxu0 0.0
  %1784 = vmatpush1.msra.mxu0 0.0
  %1785 = vmatprep.subr.mxu0 0.0
  %1786 = vmatpush1.msra.mxu0 0.0
  %1787 = vmatprep.subr.mxu0 0.0
  %1788 = vmatpush1.msra.mxu0 0.0
  %1789 = vmatprep.subr.mxu0 0.0
  %1790 = vmatpush1.msra.mxu0 0.0
  %1791 = vmatprep.subr.mxu0 0.0
  %1792 = vmatpush1.msra.mxu0 0.0
  %1793 = vmatprep.subr.mxu0 0.0
  %1794 = vmatpush1.msra.mxu0 0.0
  %1795 = vmatprep.subr.mxu0 0.0
  %1796 = vmatpush1.msra.mxu0 0.0
  %1797 = vmatprep.subr.mxu0 0.0
  %1798 = vmatpush1.msra.mxu0 0.0
  %1799 = vmatprep.subr.mxu0 0.0
  %1800 = vmatpush1.msra.mxu0 0.0
  %1801 = vmatprep.subr.mxu0 0.0
  %1802 = vmatpush1.msra.mxu0 0.0
  %1803 = vmatprep.subr.mxu0 0.0
  %1804 = vmatpush1.msra.mxu0 0.0
  %1805 = vmatprep.subr.mxu0 0.0
  %1806 = vmatpush1.msra.mxu0 0.0
  %1807 = vmatprep.mubr.f32.mxu0 0.0
  %v1808 = vand.u32 %v1438, 4294901760
  %1809 = vmatmul.mubr.f32.gmra.mrb[0].mxu0 %v1808
  %v1810 = vpop.f32.mrb[0].mxu0
  %v1811 = vadd.f32 %v1737, %v1810
  %v1812 = vpop.f32.mrb[0].mxu0
  %1813 = vdwg.mxu0
  %1814 = vmatprep.subr.mxu0 0.0
  %v1815 = vand.u32 %v20, 4294901760
  %1816 = vmatpush1.msra.mxu0 %v1815
  %1817 = vmatprep.subr.mxu0 0.0
  %1818 = vmatpush1.msra.mxu0 0.0
  %1819 = vmatprep.subr.mxu0 0.0
  %1820 = vmatpush1.msra.mxu0 0.0
  %1821 = vmatprep.subr.mxu0 0.0
  %1822 = vmatpush1.msra.mxu0 0.0
  %1823 = vmatprep.subr.mxu0 0.0
  %1824 = vmatpush1.msra.mxu0 0.0
  %1825 = vmatprep.subr.mxu0 0.0
  %1826 = vmatpush1.msra.mxu0 0.0
  %1827 = vmatprep.subr.mxu0 0.0
  %1828 = vmatpush1.msra.mxu0 0.0
  %1829 = vmatprep.subr.mxu0 0.0
  %1830 = vmatpush1.msra.mxu0 0.0
  %1831 = vmatprep.subr.mxu0 0.0
  %1832 = vmatpush1.msra.mxu0 0.0
  %1833 = vmatprep.subr.mxu0 0.0
  %1834 = vmatpush1.msra.mxu0 0.0
  %1835 = vmatprep.subr.mxu0 0.0
  %1836 = vmatpush1.msra.mxu0 0.0
  %1837 = vmatprep.subr.mxu0 0.0
  %1838 = vmatpush1.msra.mxu0 0.0
  %1839 = vmatprep.subr.mxu0 0.0
  %1840 = vmatpush1.msra.mxu0 0.0
  %1841 = vmatprep.subr.mxu0 0.0
  %1842 = vmatpush1.msra.mxu0 0.0
  %1843 = vmatprep.subr.mxu0 0.0
  %1844 = vmatpush1.msra.mxu0 0.0
  %1845 = vmatprep.subr.mxu0 0.0
  %1846 = vmatpush1.msra.mxu0 0.0
  %1847 = vmatprep.subr.mxu0 0.0
  %1848 = vmatpush1.msra.mxu0 0.0
  %1849 = vmatprep.subr.mxu0 0.0
  %1850 = vmatpush1.msra.mxu0 0.0
  %1851 = vmatprep.subr.mxu0 0.0
  %1852 = vmatpush1.msra.mxu0 0.0
  %1853 = vmatprep.subr.mxu0 0.0
  %1854 = vmatpush1.msra.mxu0 0.0
  %1855 = vmatprep.subr.mxu0 0.0
  %1856 = vmatpush1.msra.mxu0 0.0
  %1857 = vmatprep.subr.mxu0 0.0
  %1858 = vmatpush1.msra.mxu0 0.0
  %1859 = vmatprep.subr.mxu0 0.0
  %1860 = vmatpush1.msra.mxu0 0.0
  %1861 = vmatprep.subr.mxu0 0.0
  %1862 = vmatpush1.msra.mxu0 0.0
  %1863 = vmatprep.subr.mxu0 0.0
  %1864 = vmatpush1.msra.mxu0 0.0
  %1865 = vmatprep.subr.mxu0 0.0
  %1866 = vmatpush1.msra.mxu0 0.0
  %1867 = vmatprep.subr.mxu0 0.0
  %1868 = vmatpush1.msra.mxu0 0.0
  %1869 = vmatprep.subr.mxu0 0.0
  %1870 = vmatpush1.msra.mxu0 0.0
  %1871 = vmatprep.subr.mxu0 0.0
  %1872 = vmatpush1.msra.mxu0 0.0
  %1873 = vmatprep.subr.mxu0 0.0
  %1874 = vmatpush1.msra.mxu0 0.0
  %1875 = vmatprep.subr.mxu0 0.0
  %1876 = vmatpush1.msra.mxu0 0.0
  %1877 = vmatprep.subr.mxu0 0.0
  %1878 = vmatpush1.msra.mxu0 0.0
  %1879 = vmatprep.mubr.f32.mxu0 0.0
  %v1880 = vand.u32 %v1438, 4294901760
  %1881 = vmatmul.mubr.f32.gmra.mrb[0].mxu0 %v1880
  %v1882 = vpop.f32.mrb[0].mxu0
  %v1883 = vadd.f32 %v1811, %v1882
  %v1884 = vpop.f32.mrb[0].mxu0
  %1885 = vdwg.mxu0
  %1887 = vrot.lane.b32.xlu0 %v1883, 96
  %v1888 = vpop.permute.xlu0 %1887
  %v1890 = vmul.f32 %v17, %v1888
  %1891 = vrot.lane.b32.xlu0 %v1883, 64
  %v1892 = vpop.permute.xlu0 %1891
  %v1894 = vmul.f32 %v18, %v1892
  %v1895 = vadd.f32 %v1890, %v1894
  %1897 = vrot.lane.b32.xlu0 %v1895, 32
  %v1898 = vpop.permute.xlu0 %1897
  %v1900 = vsel %vm486, %v1898, 0.0
  %1901 = vadd.xlane.f32.xlu0 %v1900
  %v1902 = vpop.xlane.xlu0 %1901
  %vm1903 = vcmask 7168
  %v1904 = vsel %vm1903, %v489, %v958
  %vm1905 = vcmask 15360
  %v1906 = vsel %vm1905, %v1904, %v1430
  %vm1907 = vcmask 23552
  %v1908 = vsel %vm1907, %v1906, %v1902
  %vm1909 = vcmask 31744
  %1910 = vst.msk [vmem:[%s4] sm:$0xff] %vm1909, %v1908
  // Predicated region
  $region18: #{e_score.1} parent=0 // pred_check
    _
  $region19: #{e_score.1} parent=0 // pred_check_branch
    %1912 = sbr.rel (0) target = $region21
  $region20: #{e_score.1} parent=0 // pred_region
    _
  $region21: #{e_score.1} parent=0 // pred_fallthru
    _
  // Predicated region
  $region22: #{e_score.1} parent=0 // pred_check
    _
  $region23: #{e_score.1} parent=0 // pred_check_branch
    %1914 = sbr.rel (0) target = $region25
  $region24: #{e_score.1} parent=0 // pred_region
    _
  $region25: #{e_score.1} parent=0 // pred_fallthru
    _

</llo_original>
